<compile_context>
chip_gen: v7x
topology: tpu7x:2x2x1
jax: 0.10.0
libtpu: 0.0.40
codegen_flags: <defaults>
</compile_context>

<pallas_src>
import jax
import jax.numpy as jnp
from jax.experimental import pallas as pl
from jax.experimental.pallas import tpu as pltpu


def _round_up(x, m):
    return ((x + m - 1) // m) * m


def _recsys_fused_kernel(x1_ref, x2_ref, x3_ref, x4_ref,
                         wi1_ref, bi1_ref, wi2_ref, bi2_ref,
                         wu1u_ref, wu1c_ref, bu1_ref, wu2_ref, bu2_ref,
                         o_ref):
    """One batch tile of  cat([user(x3,x4), item(x2), item(x1)], axis=1)."""
    embed = wi2_ref.shape[1]

    # Item-tower weights: read once, reused for both the pos and neg pass.
    wi1 = wi1_ref[...]
    bi1 = bi1_ref[...]
    wi2 = wi2_ref[...]
    bi2 = bi2_ref[...]

    def item_tower(x):
        h = jnp.dot(x, wi1, preferred_element_type=jnp.float32)
        h = jnp.maximum(h + bi1, 0.0)
        return jnp.dot(h, wi2, preferred_element_type=jnp.float32) + bi2

    # ---- User tower: cat(x3, x4) @ Wu1  ==  x3 @ Wu1[:U] + x4 @ Wu1[U:]
    # (pre-split weights avoid materializing the input concat anywhere).
    h_u = jnp.dot(x3_ref[...], wu1u_ref[...], preferred_element_type=jnp.float32)
    h_u = h_u + jnp.dot(x4_ref[...], wu1c_ref[...],
                        preferred_element_type=jnp.float32)
    h_u = jnp.maximum(h_u + bu1_ref[...], 0.0)
    user_out = (jnp.dot(h_u, wu2_ref[...], preferred_element_type=jnp.float32)
                + bu2_ref[...])

    # ---- Output = cat([user, item_pos(x2), item_neg(x1)], axis=1), written as
    # three lane-aligned slice stores (unmasked when embed % 128 == 0).
    o_ref[:, 0:embed] = user_out.astype(o_ref.dtype)
    o_ref[:, embed:2 * embed] = item_tower(x2_ref[...]).astype(o_ref.dtype)      # pos
    o_ref[:, 2 * embed:3 * embed] = item_tower(x1_ref[...]).astype(o_ref.dtype)  # neg


def recsysnet_forward(params, x1, x2, x3, x4, *, block_b=512):
    """RecSysNet.forward as a single fused pallas_call over a batch grid."""
    pi, pu = params["item"], params["user"]
    B, item_dim = x1.shape
    user_dim = x3.shape[1]
    ctx_dim = x4.shape[1]
    hidden = pi["w1"].shape[1]
    embed = pi["w2"].shape[1]
    out_dim = 3 * embed

    # Batch tile: keep >= 2 grid steps whenever possible (both v7x TensorCores
    # get work via the "parallel" batch axis), rounded to the sublane quantum.
    # block_b guidance: <= 512 on v7x (64 MiB VMEM); 1024-2048 is fine on
    # v5e/v6e (128 MiB VMEM) for large batches.
    if B <= 8:
        bm = B
    else:
        bm = min(block_b, _round_up(pl.cdiv(B, 2), 8))
    nb = pl.cdiv(B, bm)

    def x_spec(d):
        return pl.BlockSpec((bm, d), lambda i: (i, 0))

    def w_spec(a):
        # Full-extent block, constant index -> DMA'd once, VMEM-resident.
        return pl.BlockSpec(a.shape, lambda i: (0, 0))

    operands = (x1, x2, x3, x4,
                pi["w1"], pi["b1"], pi["w2"], pi["b2"],
                pu["w1_user"], pu["w1_ctx"], pu["b1"], pu["w2"], pu["b2"])

    act_isz = jnp.dtype(x1.dtype).itemsize
    # Explicit VMEM budget: double-buffered activation/output tiles, buffered
    # weights, f32 intermediates, 2x margin; clamped to [32 MiB, 64 MiB] so the
    # same value is valid on every TPU generation.
    tile_act = 2 * bm * (2 * item_dim + user_dim + ctx_dim + out_dim) * act_isz
    weight_bytes = 2 * sum(int(a.size) * a.dtype.itemsize for a in operands[4:])
    interm_bytes = 4 * bm * (3 * hidden + 3 * embed)  # f32 hidden/out tiles
    vmem_limit = int(min(64 << 20,
                         max(32 << 20,
                             2 * (tile_act + weight_bytes + interm_bytes))))

    flops = 2 * B * (2 * item_dim * hidden + 2 * hidden * embed
                     + (user_dim + ctx_dim) * hidden + hidden * embed)
    bytes_accessed = (sum(int(a.size) * a.dtype.itemsize for a in operands)
                      + B * out_dim * act_isz)

    return pl.pallas_call(
        _recsys_fused_kernel,
        out_shape=jax.ShapeDtypeStruct((B, out_dim), x1.dtype),
        grid=(nb,),
        in_specs=[
            x_spec(item_dim), x_spec(item_dim), x_spec(user_dim), x_spec(ctx_dim),
            w_spec(pi["w1"]), w_spec(pi["b1"]), w_spec(pi["w2"]), w_spec(pi["b2"]),
            w_spec(pu["w1_user"]), w_spec(pu["w1_ctx"]),
            w_spec(pu["b1"]), w_spec(pu["w2"]), w_spec(pu["b2"]),
        ],
        out_specs=pl.BlockSpec((bm, out_dim), lambda i: (i, 0)),
        compiler_params=pltpu.CompilerParams(
            dimension_semantics=("parallel",),
            vmem_limit_bytes=vmem_limit),
        cost_estimate=pl.CostEstimate(
            flops=flops, transcendentals=0, bytes_accessed=bytes_accessed),
    )(*operands)


def init_params(key, item_dim, user_dim, ctx_dim, hidden, embed, dtype=jnp.float32):
    ks = jax.random.split(key, 8)
    scale = 0.05
    # User tower's first weight is stored pre-split along the input axis so the
    # kernel never needs the cat(x3, x4) input.
    wu1 = scale * jax.random.normal(ks[4], (user_dim + ctx_dim, hidden), dtype)
    return {
        "item": {
            "w1": scale * jax.random.normal(ks[0], (item_dim, hidden), dtype),
            "b1": scale * jax.random.normal(ks[1], (1, hidden), dtype),
            "w2": scale * jax.random.normal(ks[2], (hidden, embed), dtype),
            "b2": scale * jax.random.normal(ks[3], (1, embed), dtype),
        },
        "user": {
            "w1_user": wu1[:user_dim],
            "w1_ctx": wu1[user_dim:],
            "b1": scale * jax.random.normal(ks[5], (1, hidden), dtype),
            "w2": scale * jax.random.normal(ks[6], (hidden, embed), dtype),
            "b2": scale * jax.random.normal(ks[7], (1, embed), dtype),
        },
    }


def ref_forward(params, x1, x2, x3, x4):
    """Pure-JAX reference mirroring the PyTorch module."""
    pi, pu = params["item"], params["user"]

    def tower(x, w1, b1, w2, b2):
        h = jnp.maximum(x @ w1 + b1, 0.0)
        return h @ w2 + b2

    wu1 = jnp.concatenate([pu["w1_user"], pu["w1_ctx"]], axis=0)
    user_out = tower(jnp.concatenate([x3, x4], axis=1),
                     wu1, pu["b1"], pu["w2"], pu["b2"])
    item_pos = tower(x2, pi["w1"], pi["b1"], pi["w2"], pi["b2"])
    item_neg = tower(x1, pi["w1"], pi["b1"], pi["w2"], pi["b2"])
    return jnp.concatenate([user_out, item_pos, item_neg], axis=1)


if __name__ == "__main__":
    B = 16
    ITEM_DIM, USER_DIM, CTX_DIM = 32, 32, 16
    # EMBED / HIDDEN padded to the 128-lane quantum -> unmasked lane-dense
    # stores and full MXU columns (pad toward 256-multiples on v6e/v7x prod).
    HIDDEN, EMBED = 128, 128

    key = jax.random.PRNGKey(0)
    k_params, k1, k2, k3, k4 = jax.random.split(key, 5)

    params = init_params(k_params, ITEM_DIM, USER_DIM, CTX_DIM, HIDDEN, EMBED)

    x1 = jax.random.normal(k1, (B, ITEM_DIM), jnp.float32)   # negative item features
    x2 = jax.random.normal(k2, (B, ITEM_DIM), jnp.float32)   # positive item features
    x3 = jax.random.normal(k3, (B, USER_DIM), jnp.float32)   # user features
    x4 = jax.random.normal(k4, (B, CTX_DIM), jnp.float32)    # user context features

    fwd = jax.jit(recsysnet_forward)

    # f32 run + correctness check against the pure-JAX reference.
    out = jax.block_until_ready(fwd(params, x1, x2, x3, x4))
    assert out.shape == (B, 3 * EMBED), out.shape
    ref = ref_forward(params, x1, x2, x3, x4)
    max_err = float(jnp.max(jnp.abs(out - ref)))
    assert max_err < 2e-3, max_err

    # bf16 path (recommended dtype on v6e/v7x): same kernel, f32 accumulation.
    cast_bf16 = lambda t: jax.tree_util.tree_map(
        lambda a: a.astype(jnp.bfloat16), t)
    out_bf16 = jax.block_until_ready(
        fwd(cast_bf16(params),
            x1.astype(jnp.bfloat16), x2.astype(jnp.bfloat16),
            x3.astype(jnp.bfloat16), x4.astype(jnp.bfloat16)))
    assert out_bf16.shape == (B, 3 * EMBED)
    bf16_err = float(jnp.max(jnp.abs(out_bf16.astype(jnp.float32) - ref)))
    assert bf16_err < 5e-2, bf16_err

    print("KERNEL_OK")
</pallas_src>

<mosaic_0001>
module attributes {stable_mosaic.version = 11 : i64} {
  func.func @_recsys_fused_kernel(%arg0: i32, %arg1: memref<8x32xf32, #tpu.memory_space<vmem>>, %arg2: memref<8x32xf32, #tpu.memory_space<vmem>>, %arg3: memref<8x32xf32, #tpu.memory_space<vmem>>, %arg4: memref<8x16xf32, #tpu.memory_space<vmem>>, %arg5: memref<32x128xf32, #tpu.memory_space<vmem>>, %arg6: memref<1x128xf32, #tpu.memory_space<vmem>>, %arg7: memref<128x128xf32, #tpu.memory_space<vmem>>, %arg8: memref<1x128xf32, #tpu.memory_space<vmem>>, %arg9: memref<32x128xf32, #tpu.memory_space<vmem>>, %arg10: memref<16x128xf32, #tpu.memory_space<vmem>>, %arg11: memref<1x128xf32, #tpu.memory_space<vmem>>, %arg12: memref<128x128xf32, #tpu.memory_space<vmem>>, %arg13: memref<1x128xf32, #tpu.memory_space<vmem>>, %arg14: memref<8x384xf32, #tpu.memory_space<vmem>>) attributes {dimension_semantics = [#tpu.dimension_semantics<parallel>], iteration_bounds = array<i64: 2>, scalar_prefetch = 0 : i64, scratch_operands = 0 : i64, tpu.core_type = #tpu.core_type<tc>, window_params = [{transform_indices = @transform_0, window_bounds = array<i64: 8, 32>}, {transform_indices = @transform_1, window_bounds = array<i64: 8, 32>}, {transform_indices = @transform_2, window_bounds = array<i64: 8, 32>}, {transform_indices = @transform_3, window_bounds = array<i64: 8, 16>}, {pipeline_mode = #tpu.pipeline_mode<synchronous>, transform_indices = @transform_4, window_bounds = array<i64: 32, 128>}, {pipeline_mode = #tpu.pipeline_mode<synchronous>, transform_indices = @transform_5, window_bounds = array<i64: 1, 128>}, {pipeline_mode = #tpu.pipeline_mode<synchronous>, transform_indices = @transform_6, window_bounds = array<i64: 128, 128>}, {pipeline_mode = #tpu.pipeline_mode<synchronous>, transform_indices = @transform_7, window_bounds = array<i64: 1, 128>}, {pipeline_mode = #tpu.pipeline_mode<synchronous>, transform_indices = @transform_8, window_bounds = array<i64: 32, 128>}, {pipeline_mode = #tpu.pipeline_mode<synchronous>, transform_indices = @transform_9, window_bounds = array<i64: 16, 128>}, {pipeline_mode = #tpu.pipeline_mode<synchronous>, transform_indices = @transform_10, window_bounds = array<i64: 1, 128>}, {pipeline_mode = #tpu.pipeline_mode<synchronous>, transform_indices = @transform_11, window_bounds = array<i64: 128, 128>}, {pipeline_mode = #tpu.pipeline_mode<synchronous>, transform_indices = @transform_12, window_bounds = array<i64: 1, 128>}, {transform_indices = @transform_13, window_bounds = array<i64: 8, 384>}]} {
    %c0 = arith.constant 0 : index
    %c0_0 = arith.constant 0 : index
    %0 = vector.load %arg5[%c0, %c0_0] : memref<32x128xf32, #tpu.memory_space<vmem>>, vector<32x128xf32>
    %c0_1 = arith.constant 0 : index
    %c0_2 = arith.constant 0 : index
    %1 = vector.load %arg6[%c0_1, %c0_2] : memref<1x128xf32, #tpu.memory_space<vmem>>, vector<1x128xf32>
    %c0_3 = arith.constant 0 : index
    %c0_4 = arith.constant 0 : index
    %2 = vector.load %arg7[%c0_3, %c0_4] : memref<128x128xf32, #tpu.memory_space<vmem>>, vector<128x128xf32>
    %c0_5 = arith.constant 0 : index
    %c0_6 = arith.constant 0 : index
    %3 = vector.load %arg8[%c0_5, %c0_6] : memref<1x128xf32, #tpu.memory_space<vmem>>, vector<1x128xf32>
    %c0_7 = arith.constant 0 : index
    %c0_8 = arith.constant 0 : index
    %4 = vector.load %arg3[%c0_7, %c0_8] : memref<8x32xf32, #tpu.memory_space<vmem>>, vector<8x32xf32>
    %c0_9 = arith.constant 0 : index
    %c0_10 = arith.constant 0 : index
    %5 = vector.load %arg9[%c0_9, %c0_10] : memref<32x128xf32, #tpu.memory_space<vmem>>, vector<32x128xf32>
    %cst = arith.constant dense<0.000000e+00> : vector<8x128xf32>
    %6 = tpu.matmul %4, %5, %cst {dimension_numbers = #tpu.dot_dimension_numbers<[1], [0], [0], [1], [0, 0, 1, 1], [], []>} : vector<8x32xf32>, vector<32x128xf32>, vector<8x128xf32> -> vector<8x128xf32>
    %c0_11 = arith.constant 0 : index
    %c0_12 = arith.constant 0 : index
    %7 = vector.load %arg4[%c0_11, %c0_12] : memref<8x16xf32, #tpu.memory_space<vmem>>, vector<8x16xf32>
    %c0_13 = arith.constant 0 : index
    %c0_14 = arith.constant 0 : index
    %8 = vector.load %arg10[%c0_13, %c0_14] : memref<16x128xf32, #tpu.memory_space<vmem>>, vector<16x128xf32>
    %cst_15 = arith.constant dense<0.000000e+00> : vector<8x128xf32>
    %9 = tpu.matmul %7, %8, %cst_15 {dimension_numbers = #tpu.dot_dimension_numbers<[1], [0], [0], [1], [0, 0, 1, 1], [], []>} : vector<8x16xf32>, vector<16x128xf32>, vector<8x128xf32> -> vector<8x128xf32>
    %10 = arith.addf %6, %9 : vector<8x128xf32>
    %c0_16 = arith.constant 0 : index
    %c0_17 = arith.constant 0 : index
    %11 = vector.load %arg11[%c0_16, %c0_17] : memref<1x128xf32, #tpu.memory_space<vmem>>, vector<1x128xf32>
    %12 = vector.broadcast %11 : vector<1x128xf32> to vector<8x128xf32>
    %13 = arith.addf %10, %12 : vector<8x128xf32>
    %cst_18 = arith.constant 0.000000e+00 : f32
    %14 = vector.broadcast %cst_18 : f32 to vector<8x128xf32>
    %15 = arith.maximumf %13, %14 : vector<8x128xf32>
    %c0_19 = arith.constant 0 : index
    %c0_20 = arith.constant 0 : index
    %16 = vector.load %arg12[%c0_19, %c0_20] : memref<128x128xf32, #tpu.memory_space<vmem>>, vector<128x128xf32>
    %cst_21 = arith.constant dense<0.000000e+00> : vector<8x128xf32>
    %17 = tpu.matmul %15, %16, %cst_21 {dimension_numbers = #tpu.dot_dimension_numbers<[1], [0], [0], [1], [0, 0, 1, 1], [], []>} : vector<8x128xf32>, vector<128x128xf32>, vector<8x128xf32> -> vector<8x128xf32>
    %c0_22 = arith.constant 0 : index
    %c0_23 = arith.constant 0 : index
    %18 = vector.load %arg13[%c0_22, %c0_23] : memref<1x128xf32, #tpu.memory_space<vmem>>, vector<1x128xf32>
    %19 = vector.broadcast %18 : vector<1x128xf32> to vector<8x128xf32>
    %20 = arith.addf %17, %19 : vector<8x128xf32>
    %c0_24 = arith.constant 0 : index
    %c0_25 = arith.constant 0 : index
    %21 = vector.load %arg14[%c0_24, %c0_25] : memref<8x384xf32, #tpu.memory_space<vmem>>, vector<8x128xf32>
    tpu.vector_store %arg14[%c0_24, %c0_25], %20 {strides = array<i32>} : memref<8x384xf32, #tpu.memory_space<vmem>>, vector<8x128xf32>,
    %c0_26 = arith.constant 0 : index
    %c0_27 = arith.constant 0 : index
    %22 = vector.load %arg2[%c0_26, %c0_27] : memref<8x32xf32, #tpu.memory_space<vmem>>, vector<8x32xf32>
    %cst_28 = arith.constant dense<0.000000e+00> : vector<8x128xf32>
    %23 = tpu.matmul %22, %0, %cst_28 {dimension_numbers = #tpu.dot_dimension_numbers<[1], [0], [0], [1], [0, 0, 1, 1], [], []>} : vector<8x32xf32>, vector<32x128xf32>, vector<8x128xf32> -> vector<8x128xf32>
    %24 = vector.broadcast %1 : vector<1x128xf32> to vector<8x128xf32>
    %25 = arith.addf %23, %24 : vector<8x128xf32>
    %cst_29 = arith.constant 0.000000e+00 : f32
    %26 = vector.broadcast %cst_29 : f32 to vector<8x128xf32>
    %27 = arith.maximumf %25, %26 : vector<8x128xf32>
    %cst_30 = arith.constant dense<0.000000e+00> : vector<8x128xf32>
    %28 = tpu.matmul %27, %2, %cst_30 {dimension_numbers = #tpu.dot_dimension_numbers<[1], [0], [0], [1], [0, 0, 1, 1], [], []>} : vector<8x128xf32>, vector<128x128xf32>, vector<8x128xf32> -> vector<8x128xf32>
    %29 = vector.broadcast %3 : vector<1x128xf32> to vector<8x128xf32>
    %30 = arith.addf %28, %29 : vector<8x128xf32>
    %c0_31 = arith.constant 0 : index
    %c128 = arith.constant 128 : index
    %31 = vector.load %arg14[%c0_31, %c128] : memref<8x384xf32, #tpu.memory_space<vmem>>, vector<8x128xf32>
    tpu.vector_store %arg14[%c0_31, %c128], %30 {strides = array<i32>} : memref<8x384xf32, #tpu.memory_space<vmem>>, vector<8x128xf32>,
    %c0_32 = arith.constant 0 : index
    %c0_33 = arith.constant 0 : index
    %32 = vector.load %arg1[%c0_32, %c0_33] : memref<8x32xf32, #tpu.memory_space<vmem>>, vector<8x32xf32>
    %cst_34 = arith.constant dense<0.000000e+00> : vector<8x128xf32>
    %33 = tpu.matmul %32, %0, %cst_34 {dimension_numbers = #tpu.dot_dimension_numbers<[1], [0], [0], [1], [0, 0, 1, 1], [], []>} : vector<8x32xf32>, vector<32x128xf32>, vector<8x128xf32> -> vector<8x128xf32>
    %34 = vector.broadcast %1 : vector<1x128xf32> to vector<8x128xf32>
    %35 = arith.addf %33, %34 : vector<8x128xf32>
    %cst_35 = arith.constant 0.000000e+00 : f32
    %36 = vector.broadcast %cst_35 : f32 to vector<8x128xf32>
    %37 = arith.maximumf %35, %36 : vector<8x128xf32>
    %cst_36 = arith.constant dense<0.000000e+00> : vector<8x128xf32>
    %38 = tpu.matmul %37, %2, %cst_36 {dimension_numbers = #tpu.dot_dimension_numbers<[1], [0], [0], [1], [0, 0, 1, 1], [], []>} : vector<8x128xf32>, vector<128x128xf32>, vector<8x128xf32> -> vector<8x128xf32>
    %39 = vector.broadcast %3 : vector<1x128xf32> to vector<8x128xf32>
    %40 = arith.addf %38, %39 : vector<8x128xf32>
    %c0_37 = arith.constant 0 : index
    %c256 = arith.constant 256 : index
    %41 = vector.load %arg14[%c0_37, %c256] : memref<8x384xf32, #tpu.memory_space<vmem>>, vector<8x128xf32>
    tpu.vector_store %arg14[%c0_37, %c256], %40 {strides = array<i32>} : memref<8x384xf32, #tpu.memory_space<vmem>>, vector<8x128xf32>,
    return
  }
  func.func @transform_0(%arg0: i32) -> (i32, i32) {
    %c0_i32 = arith.constant 0 : i32
    %c0_i32_0 = arith.constant 0 : i32
    return %arg0, %c0_i32 : i32, i32
  }
  func.func @transform_1(%arg0: i32) -> (i32, i32) {
    %c0_i32 = arith.constant 0 : i32
    %c0_i32_0 = arith.constant 0 : i32
    return %arg0, %c0_i32 : i32, i32
  }
  func.func @transform_2(%arg0: i32) -> (i32, i32) {
    %c0_i32 = arith.constant 0 : i32
    %c0_i32_0 = arith.constant 0 : i32
    return %arg0, %c0_i32 : i32, i32
  }
  func.func @transform_3(%arg0: i32) -> (i32, i32) {
    %c0_i32 = arith.constant 0 : i32
    %c0_i32_0 = arith.constant 0 : i32
    return %arg0, %c0_i32 : i32, i32
  }
  func.func @transform_4(%arg0: i32) -> (i32, i32) {
    %c0_i32 = arith.constant 0 : i32
    %c0_i32_0 = arith.constant 0 : i32
    %c0_i32_1 = arith.constant 0 : i32
    return %c0_i32, %c0_i32_0 : i32, i32
  }
  func.func @transform_5(%arg0: i32) -> (i32, i32) {
    %c0_i32 = arith.constant 0 : i32
    %c0_i32_0 = arith.constant 0 : i32
    %c0_i32_1 = arith.constant 0 : i32
    return %c0_i32, %c0_i32_0 : i32, i32
  }
  func.func @transform_6(%arg0: i32) -> (i32, i32) {
    %c0_i32 = arith.constant 0 : i32
    %c0_i32_0 = arith.constant 0 : i32
    %c0_i32_1 = arith.constant 0 : i32
    return %c0_i32, %c0_i32_0 : i32, i32
  }
  func.func @transform_7(%arg0: i32) -> (i32, i32) {
    %c0_i32 = arith.constant 0 : i32
    %c0_i32_0 = arith.constant 0 : i32
    %c0_i32_1 = arith.constant 0 : i32
    return %c0_i32, %c0_i32_0 : i32, i32
  }
  func.func @transform_8(%arg0: i32) -> (i32, i32) {
    %c0_i32 = arith.constant 0 : i32
    %c0_i32_0 = arith.constant 0 : i32
    %c0_i32_1 = arith.constant 0 : i32
    return %c0_i32, %c0_i32_0 : i32, i32
  }
  func.func @transform_9(%arg0: i32) -> (i32, i32) {
    %c0_i32 = arith.constant 0 : i32
    %c0_i32_0 = arith.constant 0 : i32
    %c0_i32_1 = arith.constant 0 : i32
    return %c0_i32, %c0_i32_0 : i32, i32
  }
  func.func @transform_10(%arg0: i32) -> (i32, i32) {
    %c0_i32 = arith.constant 0 : i32
    %c0_i32_0 = arith.constant 0 : i32
    %c0_i32_1 = arith.constant 0 : i32
    return %c0_i32, %c0_i32_0 : i32, i32
  }
  func.func @transform_11(%arg0: i32) -> (i32, i32) {
    %c0_i32 = arith.constant 0 : i32
    %c0_i32_0 = arith.constant 0 : i32
    %c0_i32_1 = arith.constant 0 : i32
    return %c0_i32, %c0_i32_0 : i32, i32
  }
  func.func @transform_12(%arg0: i32) -> (i32, i32) {
    %c0_i32 = arith.constant 0 : i32
    %c0_i32_0 = arith.constant 0 : i32
    %c0_i32_1 = arith.constant 0 : i32
    return %c0_i32, %c0_i32_0 : i32, i32
  }
  func.func @transform_13(%arg0: i32) -> (i32, i32) {
    %c0_i32 = arith.constant 0 : i32
    %c0_i32_0 = arith.constant 0 : i32
    return %arg0, %c0_i32 : i32, i32
  }
}

</mosaic_0001>

<llo_original>
// kernel: recsysnet_forward.1
$region0: #{recsysnet_forward.1}
  #allocation0 [shape = 'u32[]', space=smem, size = 0x4, offset = 0x4, fixed_abs, tag = 'smem constant byte address 0x4 - core index']
  #allocation1 [shape = 'u32[144,128]{1,0:T(1,128)}', space=vmem, size = 0x12000, scoped, tag = 'internal scratch']
  %s0 = inlined_call_operand.vmem [shape: f32[16,32], index: 0, kind: input, shape index: {}]
  %s1 = inlined_call_operand.vmem [shape: f32[16,32], index: 1, kind: input, shape index: {}]
  %s2 = inlined_call_operand.hbm [shape: f32[16,32], index: 2, kind: input, shape index: {}]
  %s3 = inlined_call_operand.hbm [shape: f32[16,16], index: 3, kind: input, shape index: {}]
  %s4 = inlined_call_operand.hbm [shape: f32[32,128], index: 4, kind: input, shape index: {}]
  %s5 = inlined_call_operand.hbm [shape: f32[1,128], index: 5, kind: input, shape index: {}]
  %s6 = inlined_call_operand.hbm [shape: f32[128,128], index: 6, kind: input, shape index: {}]
  %s7 = inlined_call_operand.vmem [shape: f32[1,128], index: 7, kind: input, shape index: {}]
  %s8 = inlined_call_operand.hbm [shape: f32[32,128], index: 8, kind: input, shape index: {}]
  %s9 = inlined_call_operand.hbm [shape: f32[16,128], index: 9, kind: input, shape index: {}]
  %s10 = inlined_call_operand.vmem [shape: f32[1,128], index: 10, kind: input, shape index: {}]
  %s11 = inlined_call_operand.hbm [shape: f32[128,128], index: 11, kind: input, shape index: {}]
  %s12 = inlined_call_operand.hbm [shape: f32[1,128], index: 12, kind: input, shape index: {}]
  %s13 = inlined_call_operand.hbm [shape: f32[16,384], index: 13, kind: output, shape index: {}]
  %s14 = sld [smem:[#allocation0]]
  $region121: #{recsysnet_forward.1} parent=0
    _
  %s16 = ssub.s32 1, %s14
  %s17 = scalar_select 0, %s16, %s14
  $region1: #{recsysnet_forward.1} parent=0
    #allocation2 [shape = 'u8[8192]{0}', space=vmem, size = 0x2000, scoped, tag = 'input window, operand 2']
    #allocation3 [shape = 's32[2]{0}', space=sflag, size = 0x8, scoped, tag = 'scoped memory for recsysnet_forward.1']
    #allocation4 [shape = 's32[2]{0}', space=sflag, size = 0x8, scoped, tag = 'scoped memory for recsysnet_forward.1']
    #allocation5 [shape = 'u8[8192]{0}', space=vmem, size = 0x2000, scoped, tag = 'input window, operand 3']
    #allocation6 [shape = 's32[2]{0}', space=sflag, size = 0x8, scoped, tag = 'scoped memory for recsysnet_forward.1']
    #allocation7 [shape = 'u8[16384]{0}', space=vmem, size = 0x4000, scoped, tag = 'input window, operand 4, single buffered']
    #allocation8 [shape = 'u8[512]{0}', space=vmem, size = 0x400, scoped, tag = 'input window, operand 5, single buffered']
    #allocation9 [shape = 's32[1]{0}', space=sflag, size = 0x4, scoped, tag = 'scoped memory for recsysnet_forward.1']
    #allocation10 [shape = 'u8[65536]{0}', space=vmem, size = 0x10000, scoped, tag = 'input window, operand 6, single buffered']
    #allocation11 [shape = 'u8[16384]{0}', space=vmem, size = 0x4000, scoped, tag = 'input window, operand 8, single buffered']
    #allocation12 [shape = 's32[1]{0}', space=sflag, size = 0x4, scoped, tag = 'scoped memory for recsysnet_forward.1']
    #allocation13 [shape = 'u8[8192]{0}', space=vmem, size = 0x2000, scoped, tag = 'input window, operand 9, single buffered']
    #allocation14 [shape = 'u8[65536]{0}', space=vmem, size = 0x10000, scoped, tag = 'input window, operand 11, single buffered']
    #allocation15 [shape = 's32[1]{0}', space=sflag, size = 0x4, scoped, tag = 'scoped memory for recsysnet_forward.1']
    #allocation16 [shape = 'u8[512]{0}', space=vmem, size = 0x400, scoped, tag = 'input window, operand 12, single buffered']
    #allocation17 [shape = 'u8[24576]{0}', space=vmem, size = 0x6000, scoped, tag = 'output window, operand 0']
    %18 = vsyncpa [#allocation3], 0
    %s19 = scalar_lea.sflag [#allocation3], 1
    %20 = vsyncpa %s19, 0
    %21 = vsyncpa [#allocation6], 0
    %s22 = scalar_lea.sflag [#allocation6], 1
    %23 = vsyncpa %s22, 0
    %24 = vsyncpa [#allocation9], 0
    %25 = vsyncpa [#allocation12], 0
    %26 = vsyncpa [#allocation15], 0
    %27 = vsyncpa [#allocation4], 0
    %s28 = scalar_lea.sflag [#allocation4], 1
    %29 = vsyncpa %s28, 0
    loop: start=0, step=1, limit=4
    $region2: #{recsysnet_forward.1} parent=1 // loop_pre_header
      _
    $region3: #{recsysnet_forward.1} parent=1 // loop_header
      %s31 = sphi 0, %s35
      %p32 = scmp.ge.s32.totalorder %s31, 4
      %s41 = sphi 0, %s43
      %s44 = sphi 0, %s41
      %s45 = sphi 0, %s44
      %s61 = sphi 0, %s45
      %s67 = sphi 0, %s69
      %s70 = sphi 0, %s67
      %s71 = sphi 0, %s70
      %s87 = sphi 0, %s71
      %s93 = sphi 0, %s95
      %s96 = sphi 0, %s93
      %s97 = sphi 0, %s96
      %s113 = sphi 0, %s97
      %s119 = sphi 0, %s121
      %s122 = sphi 0, %s119
      %s123 = sphi 0, %s122
      %s139 = sphi 0, %s123
      %s143 = sphi 0, %s143
      %s145 = sphi 0, %s143
      %s146 = sphi 0, %s145
      %s160 = sphi 0, %s146
      %s164 = sphi 0, %s164
      %s166 = sphi 0, %s164
      %s167 = sphi 0, %s166
      %s181 = sphi 0, %s167
      %s185 = sphi 0, %s185
      %s187 = sphi 0, %s185
      %s188 = sphi 0, %s187
      %s202 = sphi 0, %s188
      %s206 = sphi 0, %s206
      %s208 = sphi 0, %s206
      %s209 = sphi 0, %s208
      %s223 = sphi 0, %s209
      %s227 = sphi 0, %s227
      %s229 = sphi 0, %s227
      %s230 = sphi 0, %s229
      %s244 = sphi 0, %s230
      %s248 = sphi 0, %s248
      %s250 = sphi 0, %s248
      %s251 = sphi 0, %s250
      %s265 = sphi 0, %s251
      %s269 = sphi 0, %s269
      %s271 = sphi 0, %s269
      %s272 = sphi 0, %s271
      %s286 = sphi 0, %s272
      %s290 = sphi 0, %s290
      %s292 = sphi 0, %s290
      %s293 = sphi 0, %s292
      %s307 = sphi 0, %s293
      %s311 = sphi 0, %s311
      %s313 = sphi 0, %s311
      %s314 = sphi 0, %s313
      %s328 = sphi 0, %s314
      %s334 = sphi 0, %s336
      %s337 = sphi 0, %s334
      %s338 = sphi 0, %s337
      %s354 = sphi 0, %s338
    $region4: #{recsysnet_forward.1} parent=1 // loop_header_branch
      %34 = sbr.rel (%p32) target = $region8
    $region5: #{recsysnet_forward.1} parent=1 // loop_body
      %s36 = ssub.s32 %s31, 1
      %s37 = ssub.s32 %s31, 2
      %s38 = sadd.s32 %s31, 1
      %s39 = ssub.s32 %s31, %s38
      %p40 = scmp.eq.s32.totalorder %s39, 0
      %s42 = sadd.s32 %s41, 1
      %s43 = scalar_select %p40, %s41, %s42
      %p46 = pneg %p40
      %p47 = scmp.eq.s32.totalorder %s31, 1
      %p48 = por %p46, %p47
      %p49 = scmp.ne.s32.totalorder %s41, %s44
      %p50 = scmp.eq.s32.totalorder %s31, 0
      %p51 = por %p49, %p50
      %p52 = scmp.ne.s32.totalorder %s41, %s44
      %p53 = scmp.eq.s32.totalorder %s36, 1
      %p54 = por %p52, %p53
      %p55 = scmp.ne.s32.totalorder %s44, %s45
      %p56 = scmp.eq.s32.totalorder %s36, 0
      %p57 = por %p55, %p56
      %p58 = scmp.ne.s32.totalorder %s44, %s45
      %p59 = scmp.eq.s32.totalorder %s37, 1
      %p60 = por %p58, %p59
      %p62 = scmp.ne.s32.totalorder %s45, %s61
      %p63 = scmp.eq.s32.totalorder %s37, 0
      %p64 = por %p62, %p63
      %s65 = ssub.s32 %s31, %s38
      %p66 = scmp.eq.s32.totalorder %s65, 0
      %s68 = sadd.s32 %s67, 1
      %s69 = scalar_select %p66, %s67, %s68
      %p72 = pneg %p66
      %p73 = scmp.eq.s32.totalorder %s31, 1
      %p74 = por %p72, %p73
      %p75 = scmp.ne.s32.totalorder %s67, %s70
      %p76 = scmp.eq.s32.totalorder %s31, 0
      %p77 = por %p75, %p76
      %p78 = scmp.ne.s32.totalorder %s67, %s70
      %p79 = scmp.eq.s32.totalorder %s36, 1
      %p80 = por %p78, %p79
      %p81 = scmp.ne.s32.totalorder %s70, %s71
      %p82 = scmp.eq.s32.totalorder %s36, 0
      %p83 = por %p81, %p82
      %p84 = scmp.ne.s32.totalorder %s70, %s71
      %p85 = scmp.eq.s32.totalorder %s37, 1
      %p86 = por %p84, %p85
      %p88 = scmp.ne.s32.totalorder %s71, %s87
      %p89 = scmp.eq.s32.totalorder %s37, 0
      %p90 = por %p88, %p89
      %s91 = ssub.s32 %s31, %s38
      %p92 = scmp.eq.s32.totalorder %s91, 0
      %s94 = sadd.s32 %s93, 1
      %s95 = scalar_select %p92, %s93, %s94
      %p98 = pneg %p92
      %p99 = scmp.eq.s32.totalorder %s31, 1
      %p100 = por %p98, %p99
      %p101 = scmp.ne.s32.totalorder %s93, %s96
      %p102 = scmp.eq.s32.totalorder %s31, 0
      %p103 = por %p101, %p102
      %p104 = scmp.ne.s32.totalorder %s93, %s96
      %p105 = scmp.eq.s32.totalorder %s36, 1
      %p106 = por %p104, %p105
      %p107 = scmp.ne.s32.totalorder %s96, %s97
      %p108 = scmp.eq.s32.totalorder %s36, 0
      %p109 = por %p107, %p108
      %p110 = scmp.ne.s32.totalorder %s96, %s97
      %p111 = scmp.eq.s32.totalorder %s37, 1
      %p112 = por %p110, %p111
      %p114 = scmp.ne.s32.totalorder %s97, %s113
      %p115 = scmp.eq.s32.totalorder %s37, 0
      %p116 = por %p114, %p115
      %s117 = ssub.s32 %s31, %s38
      %p118 = scmp.eq.s32.totalorder %s117, 0
      %s120 = sadd.s32 %s119, 1
      %s121 = scalar_select %p118, %s119, %s120
      %p124 = pneg %p118
      %p125 = scmp.eq.s32.totalorder %s31, 1
      %p126 = por %p124, %p125
      %p127 = scmp.ne.s32.totalorder %s119, %s122
      %p128 = scmp.eq.s32.totalorder %s31, 0
      %p129 = por %p127, %p128
      %p130 = scmp.ne.s32.totalorder %s119, %s122
      %p131 = scmp.eq.s32.totalorder %s36, 1
      %p132 = por %p130, %p131
      %p133 = scmp.ne.s32.totalorder %s122, %s123
      %p134 = scmp.eq.s32.totalorder %s36, 0
      %p135 = por %p133, %p134
      %p136 = scmp.ne.s32.totalorder %s122, %s123
      %p137 = scmp.eq.s32.totalorder %s37, 1
      %p138 = por %p136, %p137
      %p140 = scmp.ne.s32.totalorder %s123, %s139
      %p141 = scmp.eq.s32.totalorder %s37, 0
      %p142 = por %p140, %p141
      %s144 = sadd.s32 %s143, 1
      %p147 = scmp.eq.s32.totalorder %s31, 1
      %p148 = scmp.ne.s32.totalorder %s143, %s145
      %p149 = scmp.eq.s32.totalorder %s31, 0
      %p150 = por %p148, %p149
      %p151 = scmp.ne.s32.totalorder %s143, %s145
      %p152 = scmp.eq.s32.totalorder %s36, 1
      %p153 = por %p151, %p152
      %p154 = scmp.ne.s32.totalorder %s145, %s146
      %p155 = scmp.eq.s32.totalorder %s36, 0
      %p156 = por %p154, %p155
      %p157 = scmp.ne.s32.totalorder %s145, %s146
      %p158 = scmp.eq.s32.totalorder %s37, 1
      %p159 = por %p157, %p158
      %p161 = scmp.ne.s32.totalorder %s146, %s160
      %p162 = scmp.eq.s32.totalorder %s37, 0
      %p163 = por %p161, %p162
      %s165 = sadd.s32 %s164, 1
      %p168 = scmp.eq.s32.totalorder %s31, 1
      %p169 = scmp.ne.s32.totalorder %s164, %s166
      %p170 = scmp.eq.s32.totalorder %s31, 0
      %p171 = por %p169, %p170
      %p172 = scmp.ne.s32.totalorder %s164, %s166
      %p173 = scmp.eq.s32.totalorder %s36, 1
      %p174 = por %p172, %p173
      %p175 = scmp.ne.s32.totalorder %s166, %s167
      %p176 = scmp.eq.s32.totalorder %s36, 0
      %p177 = por %p175, %p176
      %p178 = scmp.ne.s32.totalorder %s166, %s167
      %p179 = scmp.eq.s32.totalorder %s37, 1
      %p180 = por %p178, %p179
      %p182 = scmp.ne.s32.totalorder %s167, %s181
      %p183 = scmp.eq.s32.totalorder %s37, 0
      %p184 = por %p182, %p183
      %s186 = sadd.s32 %s185, 1
      %p189 = scmp.eq.s32.totalorder %s31, 1
      %p190 = scmp.ne.s32.totalorder %s185, %s187
      %p191 = scmp.eq.s32.totalorder %s31, 0
      %p192 = por %p190, %p191
      %p193 = scmp.ne.s32.totalorder %s185, %s187
      %p194 = scmp.eq.s32.totalorder %s36, 1
      %p195 = por %p193, %p194
      %p196 = scmp.ne.s32.totalorder %s187, %s188
      %p197 = scmp.eq.s32.totalorder %s36, 0
      %p198 = por %p196, %p197
      %p199 = scmp.ne.s32.totalorder %s187, %s188
      %p200 = scmp.eq.s32.totalorder %s37, 1
      %p201 = por %p199, %p200
      %p203 = scmp.ne.s32.totalorder %s188, %s202
      %p204 = scmp.eq.s32.totalorder %s37, 0
      %p205 = por %p203, %p204
      %s207 = sadd.s32 %s206, 1
      %p210 = scmp.eq.s32.totalorder %s31, 1
      %p211 = scmp.ne.s32.totalorder %s206, %s208
      %p212 = scmp.eq.s32.totalorder %s31, 0
      %p213 = por %p211, %p212
      %p214 = scmp.ne.s32.totalorder %s206, %s208
      %p215 = scmp.eq.s32.totalorder %s36, 1
      %p216 = por %p214, %p215
      %p217 = scmp.ne.s32.totalorder %s208, %s209
      %p218 = scmp.eq.s32.totalorder %s36, 0
      %p219 = por %p217, %p218
      %p220 = scmp.ne.s32.totalorder %s208, %s209
      %p221 = scmp.eq.s32.totalorder %s37, 1
      %p222 = por %p220, %p221
      %p224 = scmp.ne.s32.totalorder %s209, %s223
      %p225 = scmp.eq.s32.totalorder %s37, 0
      %p226 = por %p224, %p225
      %s228 = sadd.s32 %s227, 1
      %p231 = scmp.eq.s32.totalorder %s31, 1
      %p232 = scmp.ne.s32.totalorder %s227, %s229
      %p233 = scmp.eq.s32.totalorder %s31, 0
      %p234 = por %p232, %p233
      %p235 = scmp.ne.s32.totalorder %s227, %s229
      %p236 = scmp.eq.s32.totalorder %s36, 1
      %p237 = por %p235, %p236
      %p238 = scmp.ne.s32.totalorder %s229, %s230
      %p239 = scmp.eq.s32.totalorder %s36, 0
      %p240 = por %p238, %p239
      %p241 = scmp.ne.s32.totalorder %s229, %s230
      %p242 = scmp.eq.s32.totalorder %s37, 1
      %p243 = por %p241, %p242
      %p245 = scmp.ne.s32.totalorder %s230, %s244
      %p246 = scmp.eq.s32.totalorder %s37, 0
      %p247 = por %p245, %p246
      %s249 = sadd.s32 %s248, 1
      %p252 = scmp.eq.s32.totalorder %s31, 1
      %p253 = scmp.ne.s32.totalorder %s248, %s250
      %p254 = scmp.eq.s32.totalorder %s31, 0
      %p255 = por %p253, %p254
      %p256 = scmp.ne.s32.totalorder %s248, %s250
      %p257 = scmp.eq.s32.totalorder %s36, 1
      %p258 = por %p256, %p257
      %p259 = scmp.ne.s32.totalorder %s250, %s251
      %p260 = scmp.eq.s32.totalorder %s36, 0
      %p261 = por %p259, %p260
      %p262 = scmp.ne.s32.totalorder %s250, %s251
      %p263 = scmp.eq.s32.totalorder %s37, 1
      %p264 = por %p262, %p263
      %p266 = scmp.ne.s32.totalorder %s251, %s265
      %p267 = scmp.eq.s32.totalorder %s37, 0
      %p268 = por %p266, %p267
      %s270 = sadd.s32 %s269, 1
      %p273 = scmp.eq.s32.totalorder %s31, 1
      %p274 = scmp.ne.s32.totalorder %s269, %s271
      %p275 = scmp.eq.s32.totalorder %s31, 0
      %p276 = por %p274, %p275
      %p277 = scmp.ne.s32.totalorder %s269, %s271
      %p278 = scmp.eq.s32.totalorder %s36, 1
      %p279 = por %p277, %p278
      %p280 = scmp.ne.s32.totalorder %s271, %s272
      %p281 = scmp.eq.s32.totalorder %s36, 0
      %p282 = por %p280, %p281
      %p283 = scmp.ne.s32.totalorder %s271, %s272
      %p284 = scmp.eq.s32.totalorder %s37, 1
      %p285 = por %p283, %p284
      %p287 = scmp.ne.s32.totalorder %s272, %s286
      %p288 = scmp.eq.s32.totalorder %s37, 0
      %p289 = por %p287, %p288
      %s291 = sadd.s32 %s290, 1
      %p294 = scmp.eq.s32.totalorder %s31, 1
      %p295 = scmp.ne.s32.totalorder %s290, %s292
      %p296 = scmp.eq.s32.totalorder %s31, 0
      %p297 = por %p295, %p296
      %p298 = scmp.ne.s32.totalorder %s290, %s292
      %p299 = scmp.eq.s32.totalorder %s36, 1
      %p300 = por %p298, %p299
      %p301 = scmp.ne.s32.totalorder %s292, %s293
      %p302 = scmp.eq.s32.totalorder %s36, 0
      %p303 = por %p301, %p302
      %p304 = scmp.ne.s32.totalorder %s292, %s293
      %p305 = scmp.eq.s32.totalorder %s37, 1
      %p306 = por %p304, %p305
      %p308 = scmp.ne.s32.totalorder %s293, %s307
      %p309 = scmp.eq.s32.totalorder %s37, 0
      %p310 = por %p308, %p309
      %s312 = sadd.s32 %s311, 1
      %p315 = scmp.eq.s32.totalorder %s31, 1
      %p316 = scmp.ne.s32.totalorder %s311, %s313
      %p317 = scmp.eq.s32.totalorder %s31, 0
      %p318 = por %p316, %p317
      %p319 = scmp.ne.s32.totalorder %s311, %s313
      %p320 = scmp.eq.s32.totalorder %s36, 1
      %p321 = por %p319, %p320
      %p322 = scmp.ne.s32.totalorder %s313, %s314
      %p323 = scmp.eq.s32.totalorder %s36, 0
      %p324 = por %p322, %p323
      %p325 = scmp.ne.s32.totalorder %s313, %s314
      %p326 = scmp.eq.s32.totalorder %s37, 1
      %p327 = por %p325, %p326
      %p329 = scmp.ne.s32.totalorder %s314, %s328
      %p330 = scmp.eq.s32.totalorder %s37, 0
      %p331 = por %p329, %p330
      %s332 = ssub.s32 %s31, %s38
      %p333 = scmp.eq.s32.totalorder %s332, 0
      %s335 = sadd.s32 %s334, 1
      %s336 = scalar_select %p333, %s334, %s335
      %p339 = pneg %p333
      %p340 = scmp.eq.s32.totalorder %s31, 1
      %p341 = por %p339, %p340
      %p342 = scmp.ne.s32.totalorder %s334, %s337
      %p343 = scmp.eq.s32.totalorder %s31, 0
      %p344 = por %p342, %p343
      %p345 = scmp.ne.s32.totalorder %s334, %s337
      %p346 = scmp.eq.s32.totalorder %s36, 1
      %p347 = por %p345, %p346
      %p348 = scmp.ne.s32.totalorder %s337, %s338
      %p349 = scmp.eq.s32.totalorder %s36, 0
      %p350 = por %p348, %p349
      %p351 = scmp.ne.s32.totalorder %s337, %s338
      %p352 = scmp.eq.s32.totalorder %s37, 1
      %p353 = por %p351, %p352
      %p355 = scmp.ne.s32.totalorder %s338, %s354
      %p356 = scmp.eq.s32.totalorder %s37, 0
      %p357 = por %p355, %p356
      %p358 = scmp.le.s32.totalorder 1, %s31
      %p359 = scmp.lt.s32.totalorder %s31, 3
      %p360 = pnand %p358, %p359
      %p361 = pneg %p360
      // Predicated region
      $region9: #{recsysnet_forward.1} parent=5 // pred_check
        _
      $region10: #{recsysnet_forward.1} parent=5 // pred_check_branch
        %363 = sbr.rel (%p360) target = $region12
      $region11: #{recsysnet_forward.1} parent=5 // pred_region
        %s364 = ssub.s32 %s31, 1
        // Predicated region
        $region13: #{recsysnet_forward.1} parent=11 // pred_check
          %p365 = pneg %p156
        $region14: #{recsysnet_forward.1} parent=11 // pred_check_branch
          %367 = sbr.rel (%p365) target = $region16
        $region15: #{recsysnet_forward.1} parent=11 // pred_region
          %s369 = ssub.s32 512, 512
          %370 = vsyncadd [#allocation6], %s369
          %s371 = sshll.u32 [#allocation7], 4
          %s372 = int_to_ptr.vmem [resolvable:$true] %s371
          %377 = dma.hbm_to_vmem [thread:$0]  %s4, 512, %s372, [#allocation6], 128, 128, 8
        $region16: #{recsysnet_forward.1} parent=11 // pred_fallthru
          _
        // Predicated region
        $region17: #{recsysnet_forward.1} parent=11 // pred_check
          %p378 = pneg %p177
        $region18: #{recsysnet_forward.1} parent=11 // pred_check_branch
          %380 = sbr.rel (%p378) target = $region20
        $region19: #{recsysnet_forward.1} parent=11 // pred_region
          %s382 = ssub.s32 16, 16
          %383 = vsyncadd [#allocation9], %s382
          %s385 = sshll.u32 [#allocation8], 4
          %s386 = int_to_ptr.vmem [resolvable:$true] %s385
          %388 = dma.hbm_to_vmem [thread:$0]  %s5, 16, %s386, [#allocation9]
        $region20: #{recsysnet_forward.1} parent=11 // pred_fallthru
          _
        // Predicated region
        $region21: #{recsysnet_forward.1} parent=11 // pred_check
          %p389 = pneg %p198
        $region22: #{recsysnet_forward.1} parent=11 // pred_check_branch
          %391 = sbr.rel (%p389) target = $region24
        $region23: #{recsysnet_forward.1} parent=11 // pred_region
          %s393 = ssub.s32 2048, 2048
          %394 = vsyncadd [#allocation9], %s393
          %s395 = sshll.u32 [#allocation10], 4
          %s396 = int_to_ptr.vmem [resolvable:$true] %s395
          %401 = dma.hbm_to_vmem [thread:$0]  %s6, 2048, %s396, [#allocation9], 128, 128, 8
        $region24: #{recsysnet_forward.1} parent=11 // pred_fallthru
          _
        // Predicated region
        $region25: #{recsysnet_forward.1} parent=11 // pred_check
          %p402 = pneg %p219
        $region26: #{recsysnet_forward.1} parent=11 // pred_check_branch
          %404 = sbr.rel (%p402) target = $region28
        $region27: #{recsysnet_forward.1} parent=11 // pred_region
          _
        $region28: #{recsysnet_forward.1} parent=11 // pred_fallthru
          _
        // Predicated region
        $region29: #{recsysnet_forward.1} parent=11 // pred_check
          %p405 = pneg %p240
        $region30: #{recsysnet_forward.1} parent=11 // pred_check_branch
          %407 = sbr.rel (%p405) target = $region32
        $region31: #{recsysnet_forward.1} parent=11 // pred_region
          %s409 = ssub.s32 512, 512
          %410 = vsyncadd [#allocation12], %s409
          %s411 = sshll.u32 [#allocation11], 4
          %s412 = int_to_ptr.vmem [resolvable:$true] %s411
          %417 = dma.hbm_to_vmem [thread:$0]  %s8, 512, %s412, [#allocation12], 128, 128, 8
        $region32: #{recsysnet_forward.1} parent=11 // pred_fallthru
          _
        // Predicated region
        $region33: #{recsysnet_forward.1} parent=11 // pred_check
          %p418 = pneg %p261
        $region34: #{recsysnet_forward.1} parent=11 // pred_check_branch
          %420 = sbr.rel (%p418) target = $region36
        $region35: #{recsysnet_forward.1} parent=11 // pred_region
          %s422 = ssub.s32 256, 256
          %423 = vsyncadd [#allocation12], %s422
          %s424 = sshll.u32 [#allocation13], 4
          %s425 = int_to_ptr.vmem [resolvable:$true] %s424
          %430 = dma.hbm_to_vmem [thread:$0]  %s9, 256, %s425, [#allocation12], 128, 128, 8
        $region36: #{recsysnet_forward.1} parent=11 // pred_fallthru
          _
        // Predicated region
        $region37: #{recsysnet_forward.1} parent=11 // pred_check
          %p431 = pneg %p282
        $region38: #{recsysnet_forward.1} parent=11 // pred_check_branch
          %433 = sbr.rel (%p431) target = $region40
        $region39: #{recsysnet_forward.1} parent=11 // pred_region
          _
        $region40: #{recsysnet_forward.1} parent=11 // pred_fallthru
          _
        // Predicated region
        $region41: #{recsysnet_forward.1} parent=11 // pred_check
          %p434 = pneg %p303
        $region42: #{recsysnet_forward.1} parent=11 // pred_check_branch
          %436 = sbr.rel (%p434) target = $region44
        $region43: #{recsysnet_forward.1} parent=11 // pred_region
          %s438 = ssub.s32 2048, 2048
          %439 = vsyncadd [#allocation15], %s438
          %s440 = sshll.u32 [#allocation14], 4
          %s441 = int_to_ptr.vmem [resolvable:$true] %s440
          %446 = dma.hbm_to_vmem [thread:$0]  %s11, 2048, %s441, [#allocation15], 128, 128, 8
        $region44: #{recsysnet_forward.1} parent=11 // pred_fallthru
          _
        // Predicated region
        $region45: #{recsysnet_forward.1} parent=11 // pred_check
          %p447 = pneg %p324
        $region46: #{recsysnet_forward.1} parent=11 // pred_check_branch
          %449 = sbr.rel (%p447) target = $region48
        $region47: #{recsysnet_forward.1} parent=11 // pred_region
          %s451 = ssub.s32 16, 16
          %452 = vsyncadd [#allocation15], %s451
          %s454 = sshll.u32 [#allocation16], 4
          %s455 = int_to_ptr.vmem [resolvable:$true] %s454
          %457 = dma.hbm_to_vmem [thread:$0]  %s12, 16, %s455, [#allocation15]
        $region48: #{recsysnet_forward.1} parent=11 // pred_fallthru
          _
      $region12: #{recsysnet_forward.1} parent=5 // pred_fallthru
        _
      %p458 = scmp.lt.s32.totalorder %s31, 2
      // Predicated region
      $region49: #{recsysnet_forward.1} parent=5 // pred_check
        %p459 = pneg %p458
      $region50: #{recsysnet_forward.1} parent=5 // pred_check_branch
        %461 = sbr.rel (%p459) target = $region52
      $region51: #{recsysnet_forward.1} parent=5 // pred_region
        // Predicated region
        $region53: #{recsysnet_forward.1} parent=51 // pred_check
          %p462 = pneg %p51
        $region54: #{recsysnet_forward.1} parent=51 // pred_check_branch
          %464 = sbr.rel (%p462) target = $region56
        $region55: #{recsysnet_forward.1} parent=51 // pred_region
          %p465 = scmp.lt.s32.totalorder %s31, 1
          %s466 = scalar_select %p465, %s31, 1
          %s467 = smul.addr %s466, 8
          %s468 = scalar_lea.vmem %s0, %s467
        $region56: #{recsysnet_forward.1} parent=51 // pred_fallthru
          _
        // Predicated region
        $region57: #{recsysnet_forward.1} parent=51 // pred_check
          %p469 = pneg %p77
        $region58: #{recsysnet_forward.1} parent=51 // pred_check_branch
          %471 = sbr.rel (%p469) target = $region60
        $region59: #{recsysnet_forward.1} parent=51 // pred_region
          %p472 = scmp.lt.s32.totalorder %s31, 1
          %s473 = scalar_select %p472, %s31, 1
          %s474 = smul.addr %s473, 8
          %s475 = scalar_lea.vmem %s1, %s474
        $region60: #{recsysnet_forward.1} parent=51 // pred_fallthru
          _
        // Predicated region
        $region61: #{recsysnet_forward.1} parent=51 // pred_check
          %p476 = pneg %p103
        $region62: #{recsysnet_forward.1} parent=51 // pred_check_branch
          %478 = sbr.rel (%p476) target = $region64
        $region63: #{recsysnet_forward.1} parent=51 // pred_region
          %s479 = sand.u32 %s93, 1
          %s480 = scalar_lea.sflag [#allocation3], %s479
          %s481 = sand.u32 %s93, 1
          %s482 = smul.addr %s481, 8
          %s483 = scalar_lea.vmem [#allocation2], %s482
          %s485 = ssub.s32 128, 128
          %486 = vsyncadd %s480, %s485
          %s487 = smul.addr %s31, 128
          %s488 = scalar_lea.hbm %s2, %s487
          %s490 = sshll.u32 %s483, 4
          %s491 = int_to_ptr.vmem [resolvable:$true] %s490
          %493 = dma.hbm_to_vmem [thread:$0]  %s488, 128, %s491, %s480
        $region64: #{recsysnet_forward.1} parent=51 // pred_fallthru
          _
        // Predicated region
        $region65: #{recsysnet_forward.1} parent=51 // pred_check
          %p494 = pneg %p129
        $region66: #{recsysnet_forward.1} parent=51 // pred_check_branch
          %496 = sbr.rel (%p494) target = $region68
        $region67: #{recsysnet_forward.1} parent=51 // pred_region
          %s497 = sand.u32 %s31, 1
          %s498 = scalar_lea.sflag [#allocation6], %s497
          %s499 = sand.u32 %s119, 1
          %s500 = smul.addr %s499, 8
          %s501 = scalar_lea.vmem [#allocation5], %s500
          %s503 = ssub.s32 128, 128
          %504 = vsyncadd %s498, %s503
          %s505 = smul.addr %s31, 128
          %s506 = scalar_lea.hbm %s3, %s505
          %s508 = sshll.u32 %s501, 4
          %s509 = int_to_ptr.vmem [resolvable:$true] %s508
          %511 = dma.hbm_to_vmem [thread:$0]  %s506, 128, %s509, %s498
        $region68: #{recsysnet_forward.1} parent=51 // pred_fallthru
          _
      $region52: #{recsysnet_forward.1} parent=5 // pred_fallthru
        _
      %p512 = scmp.le.s32.totalorder 1, %s31
      %p513 = scmp.lt.s32.totalorder %s31, 3
      %p514 = pnand %p512, %p513
      %p515 = pneg %p514
      // Predicated region
      $region69: #{recsysnet_forward.1} parent=5 // pred_check
        _
      $region70: #{recsysnet_forward.1} parent=5 // pred_check_branch
        %517 = sbr.rel (%p514) target = $region72
      $region71: #{recsysnet_forward.1} parent=5 // pred_region
        %s518 = ssub.s32 %s31, 1
        %s519 = sand.u32 %s96, 1
        %s520 = scalar_lea.sflag [#allocation3], %s519
        %s521 = sand.u32 %s96, 1
        %s522 = smul.addr %s521, 8
        %s523 = scalar_lea.vmem [#allocation2], %s522
        // Predicated region
        $region73: #{recsysnet_forward.1} parent=71 // pred_check
          %p524 = pneg %p109
        $region74: #{recsysnet_forward.1} parent=71 // pred_check_branch
          %526 = sbr.rel (%p524) target = $region76
        $region75: #{recsysnet_forward.1} parent=71 // pred_region
          %527 = dma.done %s520, 128
        $region76: #{recsysnet_forward.1} parent=71 // pred_fallthru
          _
        %s528 = sand.u32 %s36, 1
        %s529 = scalar_lea.sflag [#allocation6], %s528
        %s530 = sand.u32 %s122, 1
        %s531 = smul.addr %s530, 8
        %s532 = scalar_lea.vmem [#allocation5], %s531
        // Predicated region
        $region77: #{recsysnet_forward.1} parent=71 // pred_check
          %p533 = pneg %p135
        $region78: #{recsysnet_forward.1} parent=71 // pred_check_branch
          %535 = sbr.rel (%p533) target = $region80
        $region79: #{recsysnet_forward.1} parent=71 // pred_region
          %536 = dma.done %s529, 128
        $region80: #{recsysnet_forward.1} parent=71 // pred_fallthru
          _
        // Predicated region
        $region81: #{recsysnet_forward.1} parent=71 // pred_check
          %p537 = pneg %p156
        $region82: #{recsysnet_forward.1} parent=71 // pred_check_branch
          %539 = sbr.rel (%p537) target = $region84
        $region83: #{recsysnet_forward.1} parent=71 // pred_region
          %540 = dma.done [#allocation6], 512
        $region84: #{recsysnet_forward.1} parent=71 // pred_fallthru
          _
        // Predicated region
        $region85: #{recsysnet_forward.1} parent=71 // pred_check
          %p541 = pneg %p177
        $region86: #{recsysnet_forward.1} parent=71 // pred_check_branch
          %543 = sbr.rel (%p541) target = $region88
        $region87: #{recsysnet_forward.1} parent=71 // pred_region
          %544 = dma.done [#allocation9], 16
        $region88: #{recsysnet_forward.1} parent=71 // pred_fallthru
          _
        // Predicated region
        $region89: #{recsysnet_forward.1} parent=71 // pred_check
          %p545 = pneg %p198
        $region90: #{recsysnet_forward.1} parent=71 // pred_check_branch
          %547 = sbr.rel (%p545) target = $region92
        $region91: #{recsysnet_forward.1} parent=71 // pred_region
          %548 = dma.done [#allocation9], 2048
        $region92: #{recsysnet_forward.1} parent=71 // pred_fallthru
          _
        // Predicated region
        $region93: #{recsysnet_forward.1} parent=71 // pred_check
          %p549 = pneg %p240
        $region94: #{recsysnet_forward.1} parent=71 // pred_check_branch
          %551 = sbr.rel (%p549) target = $region96
        $region95: #{recsysnet_forward.1} parent=71 // pred_region
          %552 = dma.done [#allocation12], 512
        $region96: #{recsysnet_forward.1} parent=71 // pred_fallthru
          _
        // Predicated region
        $region97: #{recsysnet_forward.1} parent=71 // pred_check
          %p553 = pneg %p261
        $region98: #{recsysnet_forward.1} parent=71 // pred_check_branch
          %555 = sbr.rel (%p553) target = $region100
        $region99: #{recsysnet_forward.1} parent=71 // pred_region
          %556 = dma.done [#allocation12], 256
        $region100: #{recsysnet_forward.1} parent=71 // pred_fallthru
          _
        // Predicated region
        $region101: #{recsysnet_forward.1} parent=71 // pred_check
          %p557 = pneg %p303
        $region102: #{recsysnet_forward.1} parent=71 // pred_check_branch
          %559 = sbr.rel (%p557) target = $region104
        $region103: #{recsysnet_forward.1} parent=71 // pred_region
          %560 = dma.done [#allocation15], 2048
        $region104: #{recsysnet_forward.1} parent=71 // pred_fallthru
          _
        // Predicated region
        $region105: #{recsysnet_forward.1} parent=71 // pred_check
          %p561 = pneg %p324
        $region106: #{recsysnet_forward.1} parent=71 // pred_check_branch
          %563 = sbr.rel (%p561) target = $region108
        $region107: #{recsysnet_forward.1} parent=71 // pred_region
          %564 = dma.done [#allocation15], 16
        $region108: #{recsysnet_forward.1} parent=71 // pred_fallthru
          _
        %p565 = scmp.lt.s32.totalorder %s36, 1
        %s566 = scalar_select %p565, %s36, 1
        %s567 = smul.addr %s566, 8
        %s568 = scalar_lea.vmem %s0, %s567
        %p569 = pneg %p57
        %p570 = pneg %p54
        %p571 = scmp.lt.s32.totalorder %s36, 1
        %s572 = scalar_select %p571, %s36, 1
        %s573 = smul.addr %s572, 8
        %s574 = scalar_lea.vmem %s1, %s573
        %p575 = pneg %p83
        %p576 = pneg %p80
        %s577 = sand.u32 %s96, 1
        %s578 = scalar_lea.sflag [#allocation3], %s577
        %s579 = sand.u32 %s96, 1
        %s580 = smul.addr %s579, 8
        %s581 = scalar_lea.vmem [#allocation2], %s580
        %p582 = pneg %p109
        %p583 = pneg %p106
        %s584 = sand.u32 %s36, 1
        %s585 = scalar_lea.sflag [#allocation6], %s584
        %s586 = sand.u32 %s122, 1
        %s587 = smul.addr %s586, 8
        %s588 = scalar_lea.vmem [#allocation5], %s587
        %p589 = pneg %p135
        %p590 = pneg %p132
        %p591 = pneg %p156
        %p592 = pneg %p153
        %p593 = pneg %p177
        %p594 = pneg %p174
        %p595 = pneg %p198
        %p596 = pneg %p195
        %p597 = pneg %p219
        %p598 = pneg %p216
        %p599 = pneg %p240
        %p600 = pneg %p237
        %p601 = pneg %p261
        %p602 = pneg %p258
        %p603 = pneg %p282
        %p604 = pneg %p279
        %p605 = pneg %p303
        %p606 = pneg %p300
        %p607 = pneg %p324
        %p608 = pneg %p321
        %p609 = pneg %p350
        %p610 = pneg %p347
        %s611 = sand.u32 %s337, 1
        %s612 = scalar_lea.sflag [#allocation4], %s611
        %s613 = sand.u32 %s337, 1
        %s614 = smul.addr %s613, 24
        %s615 = scalar_lea.vmem [#allocation17], %s614
        %p616 = scmp.lt.s32.totalorder %s36, 1
        %s617 = scalar_select %p616, %s36, 1
        %s618 = smul.addr %s617, 8
        %s619 = scalar_lea.vmem %s0, %s618
        %p620 = scmp.lt.s32.totalorder %s36, 1
        %s621 = scalar_select %p620, %s36, 1
        %s622 = smul.addr %s621, 8
        %s623 = scalar_lea.vmem %s1, %s622
        %v624 = vld [vmem:[#allocation7] sm:$0xff]
        %v625 = vld [vmem:[#allocation7 + $0x8] sm:$0xff]
        %v626 = vld [vmem:[#allocation7 + $0x10] sm:$0xff]
        %v627 = vld [vmem:[#allocation7 + $0x18] sm:$0xff]
        %v628 = vld [vmem:[#allocation8] sm:$0x1]
        %v629 = vld [vmem:[#allocation10] sm:$0xff]
        %v630 = vld [vmem:[#allocation10 + $0x8] sm:$0xff]
        %v631 = vld [vmem:[#allocation10 + $0x10] sm:$0xff]
        %v632 = vld [vmem:[#allocation10 + $0x18] sm:$0xff]
        %v633 = vld [vmem:[#allocation10 + $0x20] sm:$0xff]
        %v634 = vld [vmem:[#allocation10 + $0x28] sm:$0xff]
        %v635 = vld [vmem:[#allocation10 + $0x30] sm:$0xff]
        %v636 = vld [vmem:[#allocation10 + $0x38] sm:$0xff]
        %v637 = vld [vmem:[#allocation10 + $0x40] sm:$0xff]
        %v638 = vld [vmem:[#allocation10 + $0x48] sm:$0xff]
        %v639 = vld [vmem:[#allocation10 + $0x50] sm:$0xff]
        %v640 = vld [vmem:[#allocation10 + $0x58] sm:$0xff]
        %v641 = vld [vmem:[#allocation10 + $0x60] sm:$0xff]
        %v642 = vld [vmem:[#allocation10 + $0x68] sm:$0xff]
        %v643 = vld [vmem:[#allocation10 + $0x70] sm:$0xff]
        %v644 = vld [vmem:[#allocation10 + $0x78] sm:$0xff]
        %v645 = vld [vmem:[%s7] sm:$0x1]
        %v646 = vld [vmem:[%s523] sm:$0xff]
        %v647 = vld [vmem:[#allocation11] sm:$0xff]
        %v648 = vld [vmem:[#allocation11 + $0x8] sm:$0xff]
        %v649 = vld [vmem:[#allocation11 + $0x10] sm:$0xff]
        %v650 = vld [vmem:[#allocation11 + $0x18] sm:$0xff]
        %v651 = vld [vmem:[%s532] sm:$0xff]
        %v652 = vld [vmem:[#allocation13] sm:$0xff]
        %v653 = vld [vmem:[#allocation13 + $0x8] sm:$0xff]
        %vm654 = vcmask 130048
        %v656 = vsel %vm654, %v651, 0
        %658 = vmatprep.subr.mxu0 0.0
        %659 = vmatpush1.msra.mxu0 %v652
        %660 = vmatprep.subr.mxu0 0.0
        %661 = vmatpush1.msra.mxu0 %v653
        %662 = vmatprep.subr.mxu0 0.0
        %663 = vmatpush1.msra.mxu0 0.0
        %664 = vmatprep.subr.mxu0 0.0
        %665 = vmatpush1.msra.mxu0 0.0
        %666 = vmatprep.subr.mxu0 0.0
        %667 = vmatpush1.msra.mxu0 0.0
        %668 = vmatprep.subr.mxu0 0.0
        %669 = vmatpush1.msra.mxu0 0.0
        %670 = vmatprep.subr.mxu0 0.0
        %671 = vmatpush1.msra.mxu0 0.0
        %672 = vmatprep.subr.mxu0 0.0
        %673 = vmatpush1.msra.mxu0 0.0
        %674 = vmatprep.subr.mxu0 0.0
        %675 = vmatpush1.msra.mxu0 0.0
        %676 = vmatprep.subr.mxu0 0.0
        %677 = vmatpush1.msra.mxu0 0.0
        %678 = vmatprep.subr.mxu0 0.0
        %679 = vmatpush1.msra.mxu0 0.0
        %680 = vmatprep.subr.mxu0 0.0
        %681 = vmatpush1.msra.mxu0 0.0
        %682 = vmatprep.subr.mxu0 0.0
        %683 = vmatpush1.msra.mxu0 0.0
        %684 = vmatprep.subr.mxu0 0.0
        %685 = vmatpush1.msra.mxu0 0.0
        %686 = vmatprep.subr.mxu0 0.0
        %687 = vmatpush1.msra.mxu0 0.0
        %688 = vmatprep.subr.mxu0 0.0
        %689 = vmatpush1.msra.mxu0 0.0
        %690 = vmatprep.subr.mxu0 0.0
        %691 = vmatpush1.msra.mxu0 0.0
        %692 = vmatprep.subr.mxu0 0.0
        %693 = vmatpush1.msra.mxu0 0.0
        %694 = vmatprep.subr.mxu0 0.0
        %695 = vmatpush1.msra.mxu0 0.0
        %696 = vmatprep.subr.mxu0 0.0
        %697 = vmatpush1.msra.mxu0 0.0
        %698 = vmatprep.subr.mxu0 0.0
        %699 = vmatpush1.msra.mxu0 0.0
        %700 = vmatprep.subr.mxu0 0.0
        %701 = vmatpush1.msra.mxu0 0.0
        %702 = vmatprep.subr.mxu0 0.0
        %703 = vmatpush1.msra.mxu0 0.0
        %704 = vmatprep.subr.mxu0 0.0
        %705 = vmatpush1.msra.mxu0 0.0
        %706 = vmatprep.subr.mxu0 0.0
        %707 = vmatpush1.msra.mxu0 0.0
        %708 = vmatprep.subr.mxu0 0.0
        %709 = vmatpush1.msra.mxu0 0.0
        %710 = vmatprep.subr.mxu0 0.0
        %711 = vmatpush1.msra.mxu0 0.0
        %712 = vmatprep.subr.mxu0 0.0
        %713 = vmatpush1.msra.mxu0 0.0
        %714 = vmatprep.subr.mxu0 0.0
        %715 = vmatpush1.msra.mxu0 0.0
        %716 = vmatprep.subr.mxu0 0.0
        %717 = vmatpush1.msra.mxu0 0.0
        %718 = vmatprep.subr.mxu0 0.0
        %719 = vmatpush1.msra.mxu0 0.0
        %720 = vmatprep.subr.mxu0 0.0
        %721 = vmatpush1.msra.mxu0 0.0
        %722 = vmatprep.mubr.f32.mxu0 0.0
        %723 = vmatmul.mubr.f32.gmra.mrb[0].mxu0 %v656
        %v724 = vpop.f32.mrb[0].mxu0
        %v725 = vadd.f32 0.0, %v724
        %v726 = vpop.f32.mrb[0].mxu0
        %727 = vdwg.mxu0
        %vm728 = vcmask 261120
        %v730 = vsel %vm728, %v646, 0
        %732 = vmatprep.subr.mxu0 0.0
        %733 = vmatpush1.msra.mxu0 %v647
        %734 = vmatprep.subr.mxu0 0.0
        %735 = vmatpush1.msra.mxu0 %v648
        %736 = vmatprep.subr.mxu0 0.0
        %737 = vmatpush1.msra.mxu0 %v649
        %738 = vmatprep.subr.mxu0 0.0
        %739 = vmatpush1.msra.mxu0 %v650
        %740 = vmatprep.subr.mxu0 0.0
        %741 = vmatpush1.msra.mxu0 0.0
        %742 = vmatprep.subr.mxu0 0.0
        %743 = vmatpush1.msra.mxu0 0.0
        %744 = vmatprep.subr.mxu0 0.0
        %745 = vmatpush1.msra.mxu0 0.0
        %746 = vmatprep.subr.mxu0 0.0
        %747 = vmatpush1.msra.mxu0 0.0
        %748 = vmatprep.subr.mxu0 0.0
        %749 = vmatpush1.msra.mxu0 0.0
        %750 = vmatprep.subr.mxu0 0.0
        %751 = vmatpush1.msra.mxu0 0.0
        %752 = vmatprep.subr.mxu0 0.0
        %753 = vmatpush1.msra.mxu0 0.0
        %754 = vmatprep.subr.mxu0 0.0
        %755 = vmatpush1.msra.mxu0 0.0
        %756 = vmatprep.subr.mxu0 0.0
        %757 = vmatpush1.msra.mxu0 0.0
        %758 = vmatprep.subr.mxu0 0.0
        %759 = vmatpush1.msra.mxu0 0.0
        %760 = vmatprep.subr.mxu0 0.0
        %761 = vmatpush1.msra.mxu0 0.0
        %762 = vmatprep.subr.mxu0 0.0
        %763 = vmatpush1.msra.mxu0 0.0
        %764 = vmatprep.subr.mxu0 0.0
        %765 = vmatpush1.msra.mxu0 0.0
        %766 = vmatprep.subr.mxu0 0.0
        %767 = vmatpush1.msra.mxu0 0.0
        %768 = vmatprep.subr.mxu0 0.0
        %769 = vmatpush1.msra.mxu0 0.0
        %770 = vmatprep.subr.mxu0 0.0
        %771 = vmatpush1.msra.mxu0 0.0
        %772 = vmatprep.subr.mxu0 0.0
        %773 = vmatpush1.msra.mxu0 0.0
        %774 = vmatprep.subr.mxu0 0.0
        %775 = vmatpush1.msra.mxu0 0.0
        %776 = vmatprep.subr.mxu0 0.0
        %777 = vmatpush1.msra.mxu0 0.0
        %778 = vmatprep.subr.mxu0 0.0
        %779 = vmatpush1.msra.mxu0 0.0
        %780 = vmatprep.subr.mxu0 0.0
        %781 = vmatpush1.msra.mxu0 0.0
        %782 = vmatprep.subr.mxu0 0.0
        %783 = vmatpush1.msra.mxu0 0.0
        %784 = vmatprep.subr.mxu0 0.0
        %785 = vmatpush1.msra.mxu0 0.0
        %786 = vmatprep.subr.mxu0 0.0
        %787 = vmatpush1.msra.mxu0 0.0
        %788 = vmatprep.subr.mxu0 0.0
        %789 = vmatpush1.msra.mxu0 0.0
        %790 = vmatprep.subr.mxu0 0.0
        %791 = vmatpush1.msra.mxu0 0.0
        %792 = vmatprep.subr.mxu0 0.0
        %793 = vmatpush1.msra.mxu0 0.0
        %794 = vmatprep.subr.mxu0 0.0
        %795 = vmatpush1.msra.mxu0 0.0
        %796 = vmatprep.mubr.f32.mxu0 0.0
        %797 = vmatmul.mubr.f32.gmra.mrb[0].mxu0 %v730
        %v798 = vpop.f32.mrb[0].mxu0
        %v799 = vadd.f32 %v725, %v798
        %v800 = vpop.f32.mrb[0].mxu0
        %801 = vdwg.mxu0
        %v802 = vld [vmem:[%s10] sm:$0x1]
        %v804 = vlaneseq
        %v805 = vshrl.u32 %v804, 7
        %v806 = vsub.s32 0, %v805
        %v807 = vrot.slane %v802, %v806
        %v809 = vadd.f32 %v799, %v807
        %v810 = vmax.f32 %v809, 0.0
        %v811 = vld [vmem:[#allocation14] sm:$0xff]
        %v812 = vld [vmem:[#allocation14 + $0x8] sm:$0xff]
        %v813 = vld [vmem:[#allocation14 + $0x10] sm:$0xff]
        %v814 = vld [vmem:[#allocation14 + $0x18] sm:$0xff]
        %v815 = vld [vmem:[#allocation14 + $0x20] sm:$0xff]
        %v816 = vld [vmem:[#allocation14 + $0x28] sm:$0xff]
        %v817 = vld [vmem:[#allocation14 + $0x30] sm:$0xff]
        %v818 = vld [vmem:[#allocation14 + $0x38] sm:$0xff]
        %v819 = vld [vmem:[#allocation14 + $0x40] sm:$0xff]
        %v820 = vld [vmem:[#allocation14 + $0x48] sm:$0xff]
        %v821 = vld [vmem:[#allocation14 + $0x50] sm:$0xff]
        %v822 = vld [vmem:[#allocation14 + $0x58] sm:$0xff]
        %v823 = vld [vmem:[#allocation14 + $0x60] sm:$0xff]
        %v824 = vld [vmem:[#allocation14 + $0x68] sm:$0xff]
        %v825 = vld [vmem:[#allocation14 + $0x70] sm:$0xff]
        %v826 = vld [vmem:[#allocation14 + $0x78] sm:$0xff]
        %v827 = vld [vmem:[#allocation16] sm:$0x1]
        %v829 = vlaneseq
        %v830 = vshrl.u32 %v829, 7
        %v831 = vsub.s32 0, %v830
        %v832 = vrot.slane %v827, %v831
        %834 = vmatprep.subr.mxu0 0.0
        %835 = vmatpush1.msra.mxu0 %v811
        %836 = vmatprep.subr.mxu0 0.0
        %837 = vmatpush1.msra.mxu0 %v812
        %838 = vmatprep.subr.mxu0 0.0
        %839 = vmatpush1.msra.mxu0 %v813
        %840 = vmatprep.subr.mxu0 0.0
        %841 = vmatpush1.msra.mxu0 %v814
        %842 = vmatprep.subr.mxu0 0.0
        %843 = vmatpush1.msra.mxu0 %v815
        %844 = vmatprep.subr.mxu0 0.0
        %845 = vmatpush1.msra.mxu0 %v816
        %846 = vmatprep.subr.mxu0 0.0
        %847 = vmatpush1.msra.mxu0 %v817
        %848 = vmatprep.subr.mxu0 0.0
        %849 = vmatpush1.msra.mxu0 %v818
        %850 = vmatprep.subr.mxu0 0.0
        %851 = vmatpush1.msra.mxu0 %v819
        %852 = vmatprep.subr.mxu0 0.0
        %853 = vmatpush1.msra.mxu0 %v820
        %854 = vmatprep.subr.mxu0 0.0
        %855 = vmatpush1.msra.mxu0 %v821
        %856 = vmatprep.subr.mxu0 0.0
        %857 = vmatpush1.msra.mxu0 %v822
        %858 = vmatprep.subr.mxu0 0.0
        %859 = vmatpush1.msra.mxu0 %v823
        %860 = vmatprep.subr.mxu0 0.0
        %861 = vmatpush1.msra.mxu0 %v824
        %862 = vmatprep.subr.mxu0 0.0
        %863 = vmatpush1.msra.mxu0 %v825
        %864 = vmatprep.subr.mxu0 0.0
        %865 = vmatpush1.msra.mxu0 %v826
        %866 = vmatprep.subr.mxu0 0.0
        %867 = vmatpush1.msra.mxu0 0.0
        %868 = vmatprep.subr.mxu0 0.0
        %869 = vmatpush1.msra.mxu0 0.0
        %870 = vmatprep.subr.mxu0 0.0
        %871 = vmatpush1.msra.mxu0 0.0
        %872 = vmatprep.subr.mxu0 0.0
        %873 = vmatpush1.msra.mxu0 0.0
        %874 = vmatprep.subr.mxu0 0.0
        %875 = vmatpush1.msra.mxu0 0.0
        %876 = vmatprep.subr.mxu0 0.0
        %877 = vmatpush1.msra.mxu0 0.0
        %878 = vmatprep.subr.mxu0 0.0
        %879 = vmatpush1.msra.mxu0 0.0
        %880 = vmatprep.subr.mxu0 0.0
        %881 = vmatpush1.msra.mxu0 0.0
        %882 = vmatprep.subr.mxu0 0.0
        %883 = vmatpush1.msra.mxu0 0.0
        %884 = vmatprep.subr.mxu0 0.0
        %885 = vmatpush1.msra.mxu0 0.0
        %886 = vmatprep.subr.mxu0 0.0
        %887 = vmatpush1.msra.mxu0 0.0
        %888 = vmatprep.subr.mxu0 0.0
        %889 = vmatpush1.msra.mxu0 0.0
        %890 = vmatprep.subr.mxu0 0.0
        %891 = vmatpush1.msra.mxu0 0.0
        %892 = vmatprep.subr.mxu0 0.0
        %893 = vmatpush1.msra.mxu0 0.0
        %894 = vmatprep.subr.mxu0 0.0
        %895 = vmatpush1.msra.mxu0 0.0
        %896 = vmatprep.subr.mxu0 0.0
        %897 = vmatpush1.msra.mxu0 0.0
        %898 = vmatprep.mubr.f32.mxu0 0.0
        %899 = vmatmul.mubr.f32.gmra.mrb[0].mxu0 %v810
        %v900 = vpop.f32.mrb[0].mxu0
        %v901 = vadd.f32 %v832, %v900
        %v902 = vpop.f32.mrb[0].mxu0
        %903 = vdwg.mxu0
        %904 = vst [vmem:[%s615] sm:$0xff] %v901
        %v905 = vld [vmem:[%s623] sm:$0xff]
        %v907 = vlaneseq
        %v908 = vshrl.u32 %v907, 7
        %v909 = vsub.s32 0, %v908
        %v910 = vrot.slane %v628, %v909
        %v913 = vsel %vm728, %v905, 0
        %915 = vmatprep.subr.mxu0 0.0
        %916 = vmatpush1.msra.mxu0 %v624
        %917 = vmatprep.subr.mxu0 0.0
        %918 = vmatpush1.msra.mxu0 %v625
        %919 = vmatprep.subr.mxu0 0.0
        %920 = vmatpush1.msra.mxu0 %v626
        %921 = vmatprep.subr.mxu0 0.0
        %922 = vmatpush1.msra.mxu0 %v627
        %923 = vmatprep.subr.mxu0 0.0
        %924 = vmatpush1.msra.mxu0 0.0
        %925 = vmatprep.subr.mxu0 0.0
        %926 = vmatpush1.msra.mxu0 0.0
        %927 = vmatprep.subr.mxu0 0.0
        %928 = vmatpush1.msra.mxu0 0.0
        %929 = vmatprep.subr.mxu0 0.0
        %930 = vmatpush1.msra.mxu0 0.0
        %931 = vmatprep.subr.mxu0 0.0
        %932 = vmatpush1.msra.mxu0 0.0
        %933 = vmatprep.subr.mxu0 0.0
        %934 = vmatpush1.msra.mxu0 0.0
        %935 = vmatprep.subr.mxu0 0.0
        %936 = vmatpush1.msra.mxu0 0.0
        %937 = vmatprep.subr.mxu0 0.0
        %938 = vmatpush1.msra.mxu0 0.0
        %939 = vmatprep.subr.mxu0 0.0
        %940 = vmatpush1.msra.mxu0 0.0
        %941 = vmatprep.subr.mxu0 0.0
        %942 = vmatpush1.msra.mxu0 0.0
        %943 = vmatprep.subr.mxu0 0.0
        %944 = vmatpush1.msra.mxu0 0.0
        %945 = vmatprep.subr.mxu0 0.0
        %946 = vmatpush1.msra.mxu0 0.0
        %947 = vmatprep.subr.mxu0 0.0
        %948 = vmatpush1.msra.mxu0 0.0
        %949 = vmatprep.subr.mxu0 0.0
        %950 = vmatpush1.msra.mxu0 0.0
        %951 = vmatprep.subr.mxu0 0.0
        %952 = vmatpush1.msra.mxu0 0.0
        %953 = vmatprep.subr.mxu0 0.0
        %954 = vmatpush1.msra.mxu0 0.0
        %955 = vmatprep.subr.mxu0 0.0
        %956 = vmatpush1.msra.mxu0 0.0
        %957 = vmatprep.subr.mxu0 0.0
        %958 = vmatpush1.msra.mxu0 0.0
        %959 = vmatprep.subr.mxu0 0.0
        %960 = vmatpush1.msra.mxu0 0.0
        %961 = vmatprep.subr.mxu0 0.0
        %962 = vmatpush1.msra.mxu0 0.0
        %963 = vmatprep.subr.mxu0 0.0
        %964 = vmatpush1.msra.mxu0 0.0
        %965 = vmatprep.subr.mxu0 0.0
        %966 = vmatpush1.msra.mxu0 0.0
        %967 = vmatprep.subr.mxu0 0.0
        %968 = vmatpush1.msra.mxu0 0.0
        %969 = vmatprep.subr.mxu0 0.0
        %970 = vmatpush1.msra.mxu0 0.0
        %971 = vmatprep.subr.mxu0 0.0
        %972 = vmatpush1.msra.mxu0 0.0
        %973 = vmatprep.subr.mxu0 0.0
        %974 = vmatpush1.msra.mxu0 0.0
        %975 = vmatprep.subr.mxu0 0.0
        %976 = vmatpush1.msra.mxu0 0.0
        %977 = vmatprep.subr.mxu0 0.0
        %978 = vmatpush1.msra.mxu0 0.0
        %979 = vmatprep.mubr.f32.mxu0 0.0
        %980 = vmatmul.mubr.f32.gmra.mrb[0].mxu0 %v913
        %v981 = vpop.f32.mrb[0].mxu0
        %v982 = vadd.f32 %v910, %v981
        %v983 = vpop.f32.mrb[0].mxu0
        %984 = vdwg.mxu0
        %v985 = vmax.f32 %v982, 0.0
        %v987 = vlaneseq
        %v988 = vshrl.u32 %v987, 7
        %v989 = vsub.s32 0, %v988
        %v990 = vrot.slane %v645, %v989
        %992 = vmatprep.subr.mxu0 0.0
        %993 = vmatpush1.msra.mxu0 %v629
        %994 = vmatprep.subr.mxu0 0.0
        %995 = vmatpush1.msra.mxu0 %v630
        %996 = vmatprep.subr.mxu0 0.0
        %997 = vmatpush1.msra.mxu0 %v631
        %998 = vmatprep.subr.mxu0 0.0
        %999 = vmatpush1.msra.mxu0 %v632
        %1000 = vmatprep.subr.mxu0 0.0
        %1001 = vmatpush1.msra.mxu0 %v633
        %1002 = vmatprep.subr.mxu0 0.0
        %1003 = vmatpush1.msra.mxu0 %v634
        %1004 = vmatprep.subr.mxu0 0.0
        %1005 = vmatpush1.msra.mxu0 %v635
        %1006 = vmatprep.subr.mxu0 0.0
        %1007 = vmatpush1.msra.mxu0 %v636
        %1008 = vmatprep.subr.mxu0 0.0
        %1009 = vmatpush1.msra.mxu0 %v637
        %1010 = vmatprep.subr.mxu0 0.0
        %1011 = vmatpush1.msra.mxu0 %v638
        %1012 = vmatprep.subr.mxu0 0.0
        %1013 = vmatpush1.msra.mxu0 %v639
        %1014 = vmatprep.subr.mxu0 0.0
        %1015 = vmatpush1.msra.mxu0 %v640
        %1016 = vmatprep.subr.mxu0 0.0
        %1017 = vmatpush1.msra.mxu0 %v641
        %1018 = vmatprep.subr.mxu0 0.0
        %1019 = vmatpush1.msra.mxu0 %v642
        %1020 = vmatprep.subr.mxu0 0.0
        %1021 = vmatpush1.msra.mxu0 %v643
        %1022 = vmatprep.subr.mxu0 0.0
        %1023 = vmatpush1.msra.mxu0 %v644
        %1024 = vmatprep.subr.mxu0 0.0
        %1025 = vmatpush1.msra.mxu0 0.0
        %1026 = vmatprep.subr.mxu0 0.0
        %1027 = vmatpush1.msra.mxu0 0.0
        %1028 = vmatprep.subr.mxu0 0.0
        %1029 = vmatpush1.msra.mxu0 0.0
        %1030 = vmatprep.subr.mxu0 0.0
        %1031 = vmatpush1.msra.mxu0 0.0
        %1032 = vmatprep.subr.mxu0 0.0
        %1033 = vmatpush1.msra.mxu0 0.0
        %1034 = vmatprep.subr.mxu0 0.0
        %1035 = vmatpush1.msra.mxu0 0.0
        %1036 = vmatprep.subr.mxu0 0.0
        %1037 = vmatpush1.msra.mxu0 0.0
        %1038 = vmatprep.subr.mxu0 0.0
        %1039 = vmatpush1.msra.mxu0 0.0
        %1040 = vmatprep.subr.mxu0 0.0
        %1041 = vmatpush1.msra.mxu0 0.0
        %1042 = vmatprep.subr.mxu0 0.0
        %1043 = vmatpush1.msra.mxu0 0.0
        %1044 = vmatprep.subr.mxu0 0.0
        %1045 = vmatpush1.msra.mxu0 0.0
        %1046 = vmatprep.subr.mxu0 0.0
        %1047 = vmatpush1.msra.mxu0 0.0
        %1048 = vmatprep.subr.mxu0 0.0
        %1049 = vmatpush1.msra.mxu0 0.0
        %1050 = vmatprep.subr.mxu0 0.0
        %1051 = vmatpush1.msra.mxu0 0.0
        %1052 = vmatprep.subr.mxu0 0.0
        %1053 = vmatpush1.msra.mxu0 0.0
        %1054 = vmatprep.subr.mxu0 0.0
        %1055 = vmatpush1.msra.mxu0 0.0
        %1056 = vmatprep.mubr.f32.mxu0 0.0
        %1057 = vmatmul.mubr.f32.gmra.mrb[0].mxu0 %v985
        %v1058 = vpop.f32.mrb[0].mxu0
        %v1059 = vadd.f32 %v990, %v1058
        %v1060 = vpop.f32.mrb[0].mxu0
        %1061 = vdwg.mxu0
        %1062 = vst [vmem:[%s615 + $0x8] sm:$0xff] %v1059
        %v1063 = vld [vmem:[%s619] sm:$0xff]
        %v1065 = vsel %vm728, %v1063, 0
        %1067 = vmatprep.subr.mxu0 0.0
        %1068 = vmatpush1.msra.mxu0 %v624
        %1069 = vmatprep.subr.mxu0 0.0
        %1070 = vmatpush1.msra.mxu0 %v625
        %1071 = vmatprep.subr.mxu0 0.0
        %1072 = vmatpush1.msra.mxu0 %v626
        %1073 = vmatprep.subr.mxu0 0.0
        %1074 = vmatpush1.msra.mxu0 %v627
        %1075 = vmatprep.subr.mxu0 0.0
        %1076 = vmatpush1.msra.mxu0 0.0
        %1077 = vmatprep.subr.mxu0 0.0
        %1078 = vmatpush1.msra.mxu0 0.0
        %1079 = vmatprep.subr.mxu0 0.0
        %1080 = vmatpush1.msra.mxu0 0.0
        %1081 = vmatprep.subr.mxu0 0.0
        %1082 = vmatpush1.msra.mxu0 0.0
        %1083 = vmatprep.subr.mxu0 0.0
        %1084 = vmatpush1.msra.mxu0 0.0
        %1085 = vmatprep.subr.mxu0 0.0
        %1086 = vmatpush1.msra.mxu0 0.0
        %1087 = vmatprep.subr.mxu0 0.0
        %1088 = vmatpush1.msra.mxu0 0.0
        %1089 = vmatprep.subr.mxu0 0.0
        %1090 = vmatpush1.msra.mxu0 0.0
        %1091 = vmatprep.subr.mxu0 0.0
        %1092 = vmatpush1.msra.mxu0 0.0
        %1093 = vmatprep.subr.mxu0 0.0
        %1094 = vmatpush1.msra.mxu0 0.0
        %1095 = vmatprep.subr.mxu0 0.0
        %1096 = vmatpush1.msra.mxu0 0.0
        %1097 = vmatprep.subr.mxu0 0.0
        %1098 = vmatpush1.msra.mxu0 0.0
        %1099 = vmatprep.subr.mxu0 0.0
        %1100 = vmatpush1.msra.mxu0 0.0
        %1101 = vmatprep.subr.mxu0 0.0
        %1102 = vmatpush1.msra.mxu0 0.0
        %1103 = vmatprep.subr.mxu0 0.0
        %1104 = vmatpush1.msra.mxu0 0.0
        %1105 = vmatprep.subr.mxu0 0.0
        %1106 = vmatpush1.msra.mxu0 0.0
        %1107 = vmatprep.subr.mxu0 0.0
        %1108 = vmatpush1.msra.mxu0 0.0
        %1109 = vmatprep.subr.mxu0 0.0
        %1110 = vmatpush1.msra.mxu0 0.0
        %1111 = vmatprep.subr.mxu0 0.0
        %1112 = vmatpush1.msra.mxu0 0.0
        %1113 = vmatprep.subr.mxu0 0.0
        %1114 = vmatpush1.msra.mxu0 0.0
        %1115 = vmatprep.subr.mxu0 0.0
        %1116 = vmatpush1.msra.mxu0 0.0
        %1117 = vmatprep.subr.mxu0 0.0
        %1118 = vmatpush1.msra.mxu0 0.0
        %1119 = vmatprep.subr.mxu0 0.0
        %1120 = vmatpush1.msra.mxu0 0.0
        %1121 = vmatprep.subr.mxu0 0.0
        %1122 = vmatpush1.msra.mxu0 0.0
        %1123 = vmatprep.subr.mxu0 0.0
        %1124 = vmatpush1.msra.mxu0 0.0
        %1125 = vmatprep.subr.mxu0 0.0
        %1126 = vmatpush1.msra.mxu0 0.0
        %1127 = vmatprep.subr.mxu0 0.0
        %1128 = vmatpush1.msra.mxu0 0.0
        %1129 = vmatprep.subr.mxu0 0.0
        %1130 = vmatpush1.msra.mxu0 0.0
        %1131 = vmatprep.mubr.f32.mxu0 0.0
        %1132 = vmatmul.mubr.f32.gmra.mrb[0].mxu0 %v1065
        %v1133 = vpop.f32.mrb[0].mxu0
        %v1134 = vadd.f32 %v910, %v1133
        %v1135 = vpop.f32.mrb[0].mxu0
        %1136 = vdwg.mxu0
        %v1137 = vmax.f32 %v1134, 0.0
        %1138 = vmatprep.subr.mxu0 0.0
        %1139 = vmatpush1.msra.mxu0 %v629
        %1140 = vmatprep.subr.mxu0 0.0
        %1141 = vmatpush1.msra.mxu0 %v630
        %1142 = vmatprep.subr.mxu0 0.0
        %1143 = vmatpush1.msra.mxu0 %v631
        %1144 = vmatprep.subr.mxu0 0.0
        %1145 = vmatpush1.msra.mxu0 %v632
        %1146 = vmatprep.subr.mxu0 0.0
        %1147 = vmatpush1.msra.mxu0 %v633
        %1148 = vmatprep.subr.mxu0 0.0
        %1149 = vmatpush1.msra.mxu0 %v634
        %1150 = vmatprep.subr.mxu0 0.0
        %1151 = vmatpush1.msra.mxu0 %v635
        %1152 = vmatprep.subr.mxu0 0.0
        %1153 = vmatpush1.msra.mxu0 %v636
        %1154 = vmatprep.subr.mxu0 0.0
        %1155 = vmatpush1.msra.mxu0 %v637
        %1156 = vmatprep.subr.mxu0 0.0
        %1157 = vmatpush1.msra.mxu0 %v638
        %1158 = vmatprep.subr.mxu0 0.0
        %1159 = vmatpush1.msra.mxu0 %v639
        %1160 = vmatprep.subr.mxu0 0.0
        %1161 = vmatpush1.msra.mxu0 %v640
        %1162 = vmatprep.subr.mxu0 0.0
        %1163 = vmatpush1.msra.mxu0 %v641
        %1164 = vmatprep.subr.mxu0 0.0
        %1165 = vmatpush1.msra.mxu0 %v642
        %1166 = vmatprep.subr.mxu0 0.0
        %1167 = vmatpush1.msra.mxu0 %v643
        %1168 = vmatprep.subr.mxu0 0.0
        %1169 = vmatpush1.msra.mxu0 %v644
        %1170 = vmatprep.subr.mxu0 0.0
        %1171 = vmatpush1.msra.mxu0 0.0
        %1172 = vmatprep.subr.mxu0 0.0
        %1173 = vmatpush1.msra.mxu0 0.0
        %1174 = vmatprep.subr.mxu0 0.0
        %1175 = vmatpush1.msra.mxu0 0.0
        %1176 = vmatprep.subr.mxu0 0.0
        %1177 = vmatpush1.msra.mxu0 0.0
        %1178 = vmatprep.subr.mxu0 0.0
        %1179 = vmatpush1.msra.mxu0 0.0
        %1180 = vmatprep.subr.mxu0 0.0
        %1181 = vmatpush1.msra.mxu0 0.0
        %1182 = vmatprep.subr.mxu0 0.0
        %1183 = vmatpush1.msra.mxu0 0.0
        %1184 = vmatprep.subr.mxu0 0.0
        %1185 = vmatpush1.msra.mxu0 0.0
        %1186 = vmatprep.subr.mxu0 0.0
        %1187 = vmatpush1.msra.mxu0 0.0
        %1188 = vmatprep.subr.mxu0 0.0
        %1189 = vmatpush1.msra.mxu0 0.0
        %1190 = vmatprep.subr.mxu0 0.0
        %1191 = vmatpush1.msra.mxu0 0.0
        %1192 = vmatprep.subr.mxu0 0.0
        %1193 = vmatpush1.msra.mxu0 0.0
        %1194 = vmatprep.subr.mxu0 0.0
        %1195 = vmatpush1.msra.mxu0 0.0
        %1196 = vmatprep.subr.mxu0 0.0
        %1197 = vmatpush1.msra.mxu0 0.0
        %1198 = vmatprep.subr.mxu0 0.0
        %1199 = vmatpush1.msra.mxu0 0.0
        %1200 = vmatprep.subr.mxu0 0.0
        %1201 = vmatpush1.msra.mxu0 0.0
        %1202 = vmatprep.mubr.f32.mxu0 0.0
        %1203 = vmatmul.mubr.f32.gmra.mrb[0].mxu0 %v1137
        %v1204 = vpop.f32.mrb[0].mxu0
        %v1205 = vadd.f32 %v990, %v1204
        %v1206 = vpop.f32.mrb[0].mxu0
        %1207 = vdwg.mxu0
        %1208 = vst [vmem:[%s615 + $0x10] sm:$0xff] %v1205
        %s1209 = sand.u32 %s337, 1
        %s1210 = scalar_lea.sflag [#allocation4], %s1209
        %s1211 = sand.u32 %s337, 1
        %s1212 = smul.addr %s1211, 24
        %s1213 = scalar_lea.vmem [#allocation17], %s1212
        // Predicated region
        $region109: #{recsysnet_forward.1} parent=71 // pred_check
          %p1214 = pneg %p347
        $region110: #{recsysnet_forward.1} parent=71 // pred_check_branch
          %1216 = sbr.rel (%p1214) target = $region112
        $region111: #{recsysnet_forward.1} parent=71 // pred_region
          %s1218 = ssub.s32 384, 384
          %1219 = vsyncadd %s1210, %s1218
          %s1220 = smul.addr %s36, 3
          %s1221 = smul.addr %s1220, 128
          %s1222 = scalar_lea.hbm %s13, %s1221
          %s1224 = sshll.u32 %s1213, 4
          %s1225 = int_to_ptr.vmem [resolvable:$true] %s1224
          %1227 = dma.vmem_to_hbm [thread:$0]  %s1225, 384, %s1222, %s1210
        $region112: #{recsysnet_forward.1} parent=71 // pred_fallthru
          _
      $region72: #{recsysnet_forward.1} parent=5 // pred_fallthru
        _
      %p1228 = scmp.le.s32.totalorder 2, %s31
      // Predicated region
      $region113: #{recsysnet_forward.1} parent=5 // pred_check
        %p1229 = pneg %p1228
      $region114: #{recsysnet_forward.1} parent=5 // pred_check_branch
        %1231 = sbr.rel (%p1229) target = $region116
      $region115: #{recsysnet_forward.1} parent=5 // pred_region
        %s1232 = ssub.s32 %s31, 2
        // Predicated region
        $region117: #{recsysnet_forward.1} parent=115 // pred_check
          %p1233 = pneg %p353
        $region118: #{recsysnet_forward.1} parent=115 // pred_check_branch
          %1235 = sbr.rel (%p1233) target = $region120
        $region119: #{recsysnet_forward.1} parent=115 // pred_region
          %s1236 = sand.u32 %s338, 1
          %s1237 = scalar_lea.sflag [#allocation4], %s1236
          %s1238 = sand.u32 %s338, 1
          %s1239 = smul.addr %s1238, 24
          %s1240 = scalar_lea.vmem [#allocation17], %s1239
          %1241 = dma.done %s1237, 384
        $region120: #{recsysnet_forward.1} parent=115 // pred_fallthru
          _
      $region116: #{recsysnet_forward.1} parent=5 // pred_fallthru
        _
    $region6: #{recsysnet_forward.1} parent=1 // loop_footer
      %s35 = sadd.s32 1, %s31
    $region7: #{recsysnet_forward.1} parent=1 // loop_footer_branch
      %30 = sbr.rel target = $region3
    $region8: #{recsysnet_forward.1} parent=1 // loop_exit
      _
    %1242 = vsyncpa [#allocation3], 1
    %s1243 = scalar_lea.sflag [#allocation3], 1
    %1244 = vsyncpa %s1243, 1
    %1245 = vsyncpa [#allocation6], 1
    %s1246 = scalar_lea.sflag [#allocation6], 1
    %1247 = vsyncpa %s1246, 1
    %1248 = vsyncpa [#allocation9], 1
    %1249 = vsyncpa [#allocation12], 1
    %1250 = vsyncpa [#allocation15], 1
    %1251 = vsyncpa [#allocation4], 1
    %s1252 = scalar_lea.sflag [#allocation4], 1
    %1253 = vsyncpa %s1252, 1

</llo_original>
